<compile_context>
chip_gen: v6e
topology: v6e:2x2x1
jax: 0.10.0
libtpu: 0.0.40
codegen_flags: <defaults>
</compile_context>

<pallas_src>
import math
import functools

import jax
import jax.numpy as jnp
from jax import lax
from jax.experimental import pallas as pl
from jax.experimental.pallas import tpu as pltpu


def _mha_kernel(x_ref, wqkv_ref, wo_ref, o_ref, qkv_ref, ctx_ref, *, H, dh, m):
    """One (bt, S, m) batch block per grid step.

    x_ref   : (bt, S, m)    activation block
    wqkv_ref: (m, 3m)       fused, pre-transposed [Wq*scale | Wk | Wv]
    wo_ref  : (m, a_m)      pre-transposed output-projection weight
    o_ref   : (bt, S, a_m)  output block
    qkv_ref : (bt, S, 3m)   compute-dtype scratch for the fused projection
    ctx_ref : (bt, S, m)    compute-dtype scratch holding concatenated heads
    """
    cdt = qkv_ref.dtype
    bt, S, _ = x_ref.shape
    a_m = o_ref.shape[-1]

    # Fused Q/K/V projection: all bt*S rows in a single MXU matmul.  The
    # attention scale is already folded into the Q columns; the weight is
    # pre-transposed so no in-kernel transpose is needed.  The f32 result is
    # cast to the compute dtype once, bounding the live (bt*S, 3m) f32 temp.
    x2 = x_ref[...].reshape(bt * S, m)
    qkv = jnp.dot(x2, wqkv_ref[...], preferred_element_type=jnp.float32)
    qkv_ref[...] = qkv.astype(cdt).reshape(bt, S, 3 * m)

    def attend(lo):
        qh = qkv_ref[:, :, pl.ds(lo, dh)]            # (bt, S, dh), scale applied
        kh = qkv_ref[:, :, pl.ds(m + lo, dh)]        # (bt, S, dh)
        vh = qkv_ref[:, :, pl.ds(2 * m + lo, dh)]    # (bt, S, dh)

        # scores = q @ k^T (batched, contraction on dh); f32 accumulation.
        s = jnp.einsum("bqd,bkd->bqk", qh, kh,
                       preferred_element_type=jnp.float32)        # (bt, S, S)

        # Numerically-stable softmax; divide -> EUP reciprocal + multiply.
        s = s - jnp.max(s, axis=-1, keepdims=True)
        p = jnp.exp(s)
        p = p * pl.reciprocal(jnp.sum(p, axis=-1, keepdims=True), approx=True)

        # Head context written straight into the "concat" scratch at its lane
        # offset -- no jnp.concatenate, probs fed to the MXU in compute dtype.
        ctx = jnp.einsum("bqk,bkd->bqd", p.astype(cdt), vh,
                         preferred_element_type=jnp.float32)      # (bt, S, dh)
        ctx_ref[:, :, pl.ds(lo, dh)] = ctx.astype(cdt)

    if dh % 128 == 0:
        # Production geometry: bounded live ranges + 128-aligned (free) slices.
        def body(h, carry):
            attend(pl.multiple_of(h * dh, 128))
            return carry
        lax.fori_loop(0, H, body, 0)
    else:
        # TODO(synk): pad dim_head to a multiple of 128 (in the fused weight,
        # ctx scratch and Wo rows) to avoid masked sub-128-lane stores here.
        for h in range(H):
            attend(h * dh)

    # Output projection: one (bt*S, m) @ (m, a_m) matmul with pre-transposed Wo.
    out = jnp.dot(ctx_ref[...].reshape(bt * S, m), wo_ref[...],
                  preferred_element_type=jnp.float32)
    o_ref[...] = out.astype(o_ref.dtype).reshape(bt, S, a_m)


def _weight_spec(shape):
    """Grid-invariant weight spec, single-buffered when supported."""
    index_map = lambda b: (0,) * len(shape)
    try:
        return pl.BlockSpec(shape, index_map, pipeline_mode=pl.Buffered(1))
    except (TypeError, AttributeError):
        return pl.BlockSpec(shape, index_map)


def visual_temporal_mha(x, w_q, w_k, w_v, w_o, *, H, max_block_rows=512):
    """x: (B, S, m); w_q/w_k/w_v: (m, m); w_o: (a_m, m) (PyTorch nn.Linear layout).

    Returns (B, S, a_m), equivalent to Visual_TemporalMultiHeadAttention.forward.
    """
    B, S, m = x.shape
    a_m = w_o.shape[0]
    assert m % H == 0, "model dim must be divisible by number of heads"
    dh = m // H
    scale = 1.0 / math.sqrt(dh)
    cdt = x.dtype  # compute dtype for MXU inputs & scratch (bf16 if caller is bf16)

    # Host-side weight prep (runs once, outside the kernel):
    #  - fold the attention scale into W_q,
    #  - fuse Q/K/V weights into a single matrix,
    #  - pre-transpose to (in, out) so the kernel never transposes weights.
    w_qkv_t = jnp.concatenate(
        [w_q.astype(cdt) * jnp.asarray(scale, cdt),
         w_k.astype(cdt),
         w_v.astype(cdt)], axis=0).T                      # (m, 3m)
    w_o_t = w_o.astype(cdt).T                             # (m, a_m)

    # Fold several batch elements into one grid step when S is small:
    # amortizes the ~0.35us/step overhead and fills MXU sublanes.
    bt = 1
    for cand in range(1, B + 1):
        if B % cand == 0 and cand * S <= max_block_rows:
            bt = cand

    # Explicit scoped-VMEM limit sized from the real buffer sum (clamped so it
    # is valid on v7x's 64 MiB physical VMEM; also lifts v5e's 16 MiB default).
    itemsize = jnp.dtype(cdt).itemsize
    est = (
        2 * bt * S * m * itemsize            # x blocks (double-buffered)
        + 2 * bt * S * a_m * itemsize        # output blocks (double-buffered)
        + (3 * m * m + m * a_m) * itemsize   # single-buffered fused weights
        + bt * S * 4 * m * itemsize          # qkv + ctx VMEM scratch
        + bt * S * 3 * m * 4                 # f32 projection result before cast
        + 3 * bt * S * S * 4                 # live f32 (bt,S,S) score/prob temps
        + bt * S * max(m, a_m) * 4           # f32 output-projection result
    )
    vmem_limit = int(max(8 << 20, min(2 * est, 64 << 20)))

    kernel = functools.partial(_mha_kernel, H=H, dh=dh, m=m)

    return pl.pallas_call(
        kernel,
        out_shape=jax.ShapeDtypeStruct((B, S, a_m), cdt),
        grid_spec=pltpu.PrefetchScalarGridSpec(
            num_scalar_prefetch=0,
            grid=(B // bt,),
            in_specs=[
                pl.BlockSpec((bt, S, m), lambda b: (b, 0, 0)),
                _weight_spec((m, 3 * m)),
                _weight_spec((m, a_m)),
            ],
            out_specs=pl.BlockSpec((bt, S, a_m), lambda b: (b, 0, 0)),
            scratch_shapes=[
                pltpu.VMEM((bt, S, 3 * m), cdt),   # fused qkv (compute dtype)
                pltpu.VMEM((bt, S, m), cdt),       # concatenated head contexts
            ],
        ),
        # Batch axis is truly parallel -> megacore / v7x 2-TensorCore sharding.
        # TODO(synk): for v7x with B==1, add a q-tile "parallel" axis so both
        # TensorCores get work (flash restructure, see module TODO).
        compiler_params=pltpu.CompilerParams(
            dimension_semantics=("parallel",),
            vmem_limit_bytes=vmem_limit),
    )(x, w_qkv_t, w_o_t)


def _reference(x, w_q, w_k, w_v, w_o, *, H):
    """Pure-JAX re-implementation of the PyTorch forward, for verification."""
    B, S, m = x.shape
    dh = m // H
    q = x @ w_q.T
    k = x @ w_k.T
    v = x @ w_v.T
    q = q.reshape(B, S, H, dh).transpose(0, 2, 1, 3)
    k = k.reshape(B, S, H, dh).transpose(0, 2, 1, 3)
    v = v.reshape(B, S, H, dh).transpose(0, 2, 1, 3)
    scores = jnp.einsum("bhqd,bhkd->bhqk", q, k) / math.sqrt(dh)
    probs = jax.nn.softmax(scores, axis=-1)
    out = jnp.einsum("bhqk,bhkd->bhqd", probs, v)
    out = out.transpose(0, 2, 1, 3).reshape(B, S, H * dh)
    return out @ w_o.T


if __name__ == "__main__":
    # Small shapes consistent with the module: batch=2, seq=8, m=32, H=4, a_m=32
    B, S, m, H, a_m = 2, 8, 32, 4, 32

    key = jax.random.PRNGKey(0)
    kx, kq, kk, kv, ko = jax.random.split(key, 5)

    x = jax.random.normal(kx, (B, S, m), dtype=jnp.float32)
    # Deterministic "Kaiming-ish" init for the Linear weights (out, in), no bias.
    w_q = jax.random.normal(kq, (m, m), dtype=jnp.float32) * (1.0 / math.sqrt(m))
    w_k = jax.random.normal(kk, (m, m), dtype=jnp.float32) * (1.0 / math.sqrt(m))
    w_v = jax.random.normal(kv, (m, m), dtype=jnp.float32) * (1.0 / math.sqrt(m))
    w_o = jax.random.normal(ko, (a_m, m), dtype=jnp.float32) * (1.0 / math.sqrt(m))

    out = visual_temporal_mha(x, w_q, w_k, w_v, w_o, H=H)
    out = jax.block_until_ready(out)

    ref = _reference(x, w_q, w_k, w_v, w_o, H=H)
    assert out.shape == (B, S, a_m), out.shape
    # Tolerance accounts for the EUP approximate reciprocal in the softmax
    # denominator and the TPU's bf16 MXU passes for f32 matmuls (the pure-JAX
    # reference uses a different accumulation order).
    assert jnp.allclose(out, ref, atol=1e-2, rtol=1e-2), (
        float(jnp.max(jnp.abs(out - ref))))

    print("KERNEL_OK")
</pallas_src>

<mosaic_0001>
module attributes {stable_mosaic.version = 11 : i64} {
  func.func @_mha_kernel(%arg0: i32, %arg1: memref<2x8x32xf32, #tpu.memory_space<vmem>>, %arg2: memref<32x96xf32, #tpu.memory_space<vmem>>, %arg3: memref<32x32xf32, #tpu.memory_space<vmem>>, %arg4: memref<2x8x32xf32, #tpu.memory_space<vmem>>, %arg5: memref<2x8x96xf32, #tpu.memory_space<vmem>>, %arg6: memref<2x8x32xf32, #tpu.memory_space<vmem>>) attributes {dimension_semantics = [#tpu.dimension_semantics<parallel>], iteration_bounds = array<i64: 1>, scalar_prefetch = 0 : i64, scratch_operands = 2 : i64, tpu.core_type = #tpu.core_type<tc>, window_params = [{transform_indices = @transform_0, window_bounds = array<i64: 2, 8, 32>}, {pipeline_mode = #tpu.pipeline_mode<synchronous>, transform_indices = @transform_1, window_bounds = array<i64: 32, 96>}, {pipeline_mode = #tpu.pipeline_mode<synchronous>, transform_indices = @transform_2, window_bounds = array<i64: 32, 32>}, {transform_indices = @transform_3, window_bounds = array<i64: 2, 8, 32>}]} {
    %c0 = arith.constant 0 : index
    %c0_0 = arith.constant 0 : index
    %c0_1 = arith.constant 0 : index
    %0 = vector.load %arg1[%c0, %c0_0, %c0_1] : memref<2x8x32xf32, #tpu.memory_space<vmem>>, vector<2x8x32xf32>
    %1 = vector.shape_cast %0 : vector<2x8x32xf32> to vector<16x32xf32>
    %c0_2 = arith.constant 0 : index
    %c0_3 = arith.constant 0 : index
    %2 = vector.load %arg2[%c0_2, %c0_3] : memref<32x96xf32, #tpu.memory_space<vmem>>, vector<32x96xf32>
    %cst = arith.constant dense<0.000000e+00> : vector<16x96xf32>
    %3 = tpu.matmul %1, %2, %cst {dimension_numbers = #tpu.dot_dimension_numbers<[1], [0], [0], [1], [0, 0, 1, 1], [], []>} : vector<16x32xf32>, vector<32x96xf32>, vector<16x96xf32> -> vector<16x96xf32>
    %4 = vector.shape_cast %3 : vector<16x96xf32> to vector<2x8x96xf32>
    %c0_4 = arith.constant 0 : index
    %c0_5 = arith.constant 0 : index
    %c0_6 = arith.constant 0 : index
    %5 = vector.load %arg5[%c0_4, %c0_5, %c0_6] : memref<2x8x96xf32, #tpu.memory_space<vmem>>, vector<2x8x96xf32>
    tpu.vector_store %arg5[%c0_4, %c0_5, %c0_6], %4 {strides = array<i32>} : memref<2x8x96xf32, #tpu.memory_space<vmem>>, vector<2x8x96xf32>,
    %c0_7 = arith.constant 0 : index
    %c0_8 = arith.constant 0 : index
    %c0_9 = arith.constant 0 : index
    %6 = vector.load %arg5[%c0_7, %c0_8, %c0_9] : memref<2x8x96xf32, #tpu.memory_space<vmem>>, vector<2x8x8xf32>
    %c0_10 = arith.constant 0 : index
    %c0_11 = arith.constant 0 : index
    %c32 = arith.constant 32 : index
    %7 = vector.load %arg5[%c0_10, %c0_11, %c32] : memref<2x8x96xf32, #tpu.memory_space<vmem>>, vector<2x8x8xf32>
    %c0_12 = arith.constant 0 : index
    %c0_13 = arith.constant 0 : index
    %c64 = arith.constant 64 : index
    %8 = vector.load %arg5[%c0_12, %c0_13, %c64] : memref<2x8x96xf32, #tpu.memory_space<vmem>>, vector<2x8x8xf32>
    "tpu.trace_start"() <{level = 10 : i32, message = "bqd,bkd->bqk"}> : () -> ()
    %cst_14 = arith.constant dense<0.000000e+00> : vector<2x8x8xf32>
    %9 = tpu.matmul %6, %7, %cst_14 {dimension_numbers = #tpu.dot_dimension_numbers<[2], [2], [1], [1], [0, 0, 0, 1, 1, 1], [0], [0]>} : vector<2x8x8xf32>, vector<2x8x8xf32>, vector<2x8x8xf32> -> vector<2x8x8xf32>
    "tpu.trace_stop"() : () -> ()
    %cst_15 = arith.constant dense<0xFF800000> : vector<2x8xf32>
    %10 = vector.multi_reduction <maximumf>, %9, %cst_15 [2] : vector<2x8x8xf32> to vector<2x8xf32>
    %11 = vector.shape_cast %10 : vector<2x8xf32> to vector<2x8x1xf32>
    %12 = vector.broadcast %11 : vector<2x8x1xf32> to vector<2x8x8xf32>
    %13 = arith.subf %9, %12 : vector<2x8x8xf32>
    %14 = math.exp %13 : vector<2x8x8xf32>
    %cst_16 = arith.constant dense<0.000000e+00> : vector<2x8xf32>
    %15 = vector.multi_reduction <add>, %14, %cst_16 [2] : vector<2x8x8xf32> to vector<2x8xf32>
    %16 = vector.shape_cast %15 : vector<2x8xf32> to vector<2x8x1xf32>
    %17 = tpu.reciprocal %16 {approx = true} : vector<2x8x1xf32> -> vector<2x8x1xf32>
    %18 = vector.broadcast %17 : vector<2x8x1xf32> to vector<2x8x8xf32>
    %19 = arith.mulf %14, %18 : vector<2x8x8xf32>
    "tpu.trace_start"() <{level = 10 : i32, message = "bqk,bkd->bqd"}> : () -> ()
    %cst_17 = arith.constant dense<0.000000e+00> : vector<2x8x8xf32>
    %20 = tpu.matmul %19, %8, %cst_17 {dimension_numbers = #tpu.dot_dimension_numbers<[2], [1], [1], [2], [0, 0, 0, 1, 1, 2], [0], [0]>} : vector<2x8x8xf32>, vector<2x8x8xf32>, vector<2x8x8xf32> -> vector<2x8x8xf32>
    "tpu.trace_stop"() : () -> ()
    %c0_18 = arith.constant 0 : index
    %c0_19 = arith.constant 0 : index
    %c0_20 = arith.constant 0 : index
    %21 = vector.load %arg6[%c0_18, %c0_19, %c0_20] : memref<2x8x32xf32, #tpu.memory_space<vmem>>, vector<2x8x8xf32>
    tpu.vector_store %arg6[%c0_18, %c0_19, %c0_20], %20 {strides = array<i32>} : memref<2x8x32xf32, #tpu.memory_space<vmem>>, vector<2x8x8xf32>,
    %c0_21 = arith.constant 0 : index
    %c0_22 = arith.constant 0 : index
    %c8 = arith.constant 8 : index
    %22 = vector.load %arg5[%c0_21, %c0_22, %c8] : memref<2x8x96xf32, #tpu.memory_space<vmem>>, vector<2x8x8xf32>
    %c0_23 = arith.constant 0 : index
    %c0_24 = arith.constant 0 : index
    %c40 = arith.constant 40 : index
    %23 = vector.load %arg5[%c0_23, %c0_24, %c40] : memref<2x8x96xf32, #tpu.memory_space<vmem>>, vector<2x8x8xf32>
    %c0_25 = arith.constant 0 : index
    %c0_26 = arith.constant 0 : index
    %c72 = arith.constant 72 : index
    %24 = vector.load %arg5[%c0_25, %c0_26, %c72] : memref<2x8x96xf32, #tpu.memory_space<vmem>>, vector<2x8x8xf32>
    "tpu.trace_start"() <{level = 10 : i32, message = "bqd,bkd->bqk"}> : () -> ()
    %cst_27 = arith.constant dense<0.000000e+00> : vector<2x8x8xf32>
    %25 = tpu.matmul %22, %23, %cst_27 {dimension_numbers = #tpu.dot_dimension_numbers<[2], [2], [1], [1], [0, 0, 0, 1, 1, 1], [0], [0]>} : vector<2x8x8xf32>, vector<2x8x8xf32>, vector<2x8x8xf32> -> vector<2x8x8xf32>
    "tpu.trace_stop"() : () -> ()
    %cst_28 = arith.constant dense<0xFF800000> : vector<2x8xf32>
    %26 = vector.multi_reduction <maximumf>, %25, %cst_28 [2] : vector<2x8x8xf32> to vector<2x8xf32>
    %27 = vector.shape_cast %26 : vector<2x8xf32> to vector<2x8x1xf32>
    %28 = vector.broadcast %27 : vector<2x8x1xf32> to vector<2x8x8xf32>
    %29 = arith.subf %25, %28 : vector<2x8x8xf32>
    %30 = math.exp %29 : vector<2x8x8xf32>
    %cst_29 = arith.constant dense<0.000000e+00> : vector<2x8xf32>
    %31 = vector.multi_reduction <add>, %30, %cst_29 [2] : vector<2x8x8xf32> to vector<2x8xf32>
    %32 = vector.shape_cast %31 : vector<2x8xf32> to vector<2x8x1xf32>
    %33 = tpu.reciprocal %32 {approx = true} : vector<2x8x1xf32> -> vector<2x8x1xf32>
    %34 = vector.broadcast %33 : vector<2x8x1xf32> to vector<2x8x8xf32>
    %35 = arith.mulf %30, %34 : vector<2x8x8xf32>
    "tpu.trace_start"() <{level = 10 : i32, message = "bqk,bkd->bqd"}> : () -> ()
    %cst_30 = arith.constant dense<0.000000e+00> : vector<2x8x8xf32>
    %36 = tpu.matmul %35, %24, %cst_30 {dimension_numbers = #tpu.dot_dimension_numbers<[2], [1], [1], [2], [0, 0, 0, 1, 1, 2], [0], [0]>} : vector<2x8x8xf32>, vector<2x8x8xf32>, vector<2x8x8xf32> -> vector<2x8x8xf32>
    "tpu.trace_stop"() : () -> ()
    %c0_31 = arith.constant 0 : index
    %c0_32 = arith.constant 0 : index
    %c8_33 = arith.constant 8 : index
    %37 = vector.load %arg6[%c0_31, %c0_32, %c8_33] : memref<2x8x32xf32, #tpu.memory_space<vmem>>, vector<2x8x8xf32>
    tpu.vector_store %arg6[%c0_31, %c0_32, %c8_33], %36 {strides = array<i32>} : memref<2x8x32xf32, #tpu.memory_space<vmem>>, vector<2x8x8xf32>,
    %c0_34 = arith.constant 0 : index
    %c0_35 = arith.constant 0 : index
    %c16 = arith.constant 16 : index
    %38 = vector.load %arg5[%c0_34, %c0_35, %c16] : memref<2x8x96xf32, #tpu.memory_space<vmem>>, vector<2x8x8xf32>
    %c0_36 = arith.constant 0 : index
    %c0_37 = arith.constant 0 : index
    %c48 = arith.constant 48 : index
    %39 = vector.load %arg5[%c0_36, %c0_37, %c48] : memref<2x8x96xf32, #tpu.memory_space<vmem>>, vector<2x8x8xf32>
    %c0_38 = arith.constant 0 : index
    %c0_39 = arith.constant 0 : index
    %c80 = arith.constant 80 : index
    %40 = vector.load %arg5[%c0_38, %c0_39, %c80] : memref<2x8x96xf32, #tpu.memory_space<vmem>>, vector<2x8x8xf32>
    "tpu.trace_start"() <{level = 10 : i32, message = "bqd,bkd->bqk"}> : () -> ()
    %cst_40 = arith.constant dense<0.000000e+00> : vector<2x8x8xf32>
    %41 = tpu.matmul %38, %39, %cst_40 {dimension_numbers = #tpu.dot_dimension_numbers<[2], [2], [1], [1], [0, 0, 0, 1, 1, 1], [0], [0]>} : vector<2x8x8xf32>, vector<2x8x8xf32>, vector<2x8x8xf32> -> vector<2x8x8xf32>
    "tpu.trace_stop"() : () -> ()
    %cst_41 = arith.constant dense<0xFF800000> : vector<2x8xf32>
    %42 = vector.multi_reduction <maximumf>, %41, %cst_41 [2] : vector<2x8x8xf32> to vector<2x8xf32>
    %43 = vector.shape_cast %42 : vector<2x8xf32> to vector<2x8x1xf32>
    %44 = vector.broadcast %43 : vector<2x8x1xf32> to vector<2x8x8xf32>
    %45 = arith.subf %41, %44 : vector<2x8x8xf32>
    %46 = math.exp %45 : vector<2x8x8xf32>
    %cst_42 = arith.constant dense<0.000000e+00> : vector<2x8xf32>
    %47 = vector.multi_reduction <add>, %46, %cst_42 [2] : vector<2x8x8xf32> to vector<2x8xf32>
    %48 = vector.shape_cast %47 : vector<2x8xf32> to vector<2x8x1xf32>
    %49 = tpu.reciprocal %48 {approx = true} : vector<2x8x1xf32> -> vector<2x8x1xf32>
    %50 = vector.broadcast %49 : vector<2x8x1xf32> to vector<2x8x8xf32>
    %51 = arith.mulf %46, %50 : vector<2x8x8xf32>
    "tpu.trace_start"() <{level = 10 : i32, message = "bqk,bkd->bqd"}> : () -> ()
    %cst_43 = arith.constant dense<0.000000e+00> : vector<2x8x8xf32>
    %52 = tpu.matmul %51, %40, %cst_43 {dimension_numbers = #tpu.dot_dimension_numbers<[2], [1], [1], [2], [0, 0, 0, 1, 1, 2], [0], [0]>} : vector<2x8x8xf32>, vector<2x8x8xf32>, vector<2x8x8xf32> -> vector<2x8x8xf32>
    "tpu.trace_stop"() : () -> ()
    %c0_44 = arith.constant 0 : index
    %c0_45 = arith.constant 0 : index
    %c16_46 = arith.constant 16 : index
    %53 = vector.load %arg6[%c0_44, %c0_45, %c16_46] : memref<2x8x32xf32, #tpu.memory_space<vmem>>, vector<2x8x8xf32>
    tpu.vector_store %arg6[%c0_44, %c0_45, %c16_46], %52 {strides = array<i32>} : memref<2x8x32xf32, #tpu.memory_space<vmem>>, vector<2x8x8xf32>,
    %c0_47 = arith.constant 0 : index
    %c0_48 = arith.constant 0 : index
    %c24 = arith.constant 24 : index
    %54 = vector.load %arg5[%c0_47, %c0_48, %c24] : memref<2x8x96xf32, #tpu.memory_space<vmem>>, vector<2x8x8xf32>
    %c0_49 = arith.constant 0 : index
    %c0_50 = arith.constant 0 : index
    %c56 = arith.constant 56 : index
    %55 = vector.load %arg5[%c0_49, %c0_50, %c56] : memref<2x8x96xf32, #tpu.memory_space<vmem>>, vector<2x8x8xf32>
    %c0_51 = arith.constant 0 : index
    %c0_52 = arith.constant 0 : index
    %c88 = arith.constant 88 : index
    %56 = vector.load %arg5[%c0_51, %c0_52, %c88] : memref<2x8x96xf32, #tpu.memory_space<vmem>>, vector<2x8x8xf32>
    "tpu.trace_start"() <{level = 10 : i32, message = "bqd,bkd->bqk"}> : () -> ()
    %cst_53 = arith.constant dense<0.000000e+00> : vector<2x8x8xf32>
    %57 = tpu.matmul %54, %55, %cst_53 {dimension_numbers = #tpu.dot_dimension_numbers<[2], [2], [1], [1], [0, 0, 0, 1, 1, 1], [0], [0]>} : vector<2x8x8xf32>, vector<2x8x8xf32>, vector<2x8x8xf32> -> vector<2x8x8xf32>
    "tpu.trace_stop"() : () -> ()
    %cst_54 = arith.constant dense<0xFF800000> : vector<2x8xf32>
    %58 = vector.multi_reduction <maximumf>, %57, %cst_54 [2] : vector<2x8x8xf32> to vector<2x8xf32>
    %59 = vector.shape_cast %58 : vector<2x8xf32> to vector<2x8x1xf32>
    %60 = vector.broadcast %59 : vector<2x8x1xf32> to vector<2x8x8xf32>
    %61 = arith.subf %57, %60 : vector<2x8x8xf32>
    %62 = math.exp %61 : vector<2x8x8xf32>
    %cst_55 = arith.constant dense<0.000000e+00> : vector<2x8xf32>
    %63 = vector.multi_reduction <add>, %62, %cst_55 [2] : vector<2x8x8xf32> to vector<2x8xf32>
    %64 = vector.shape_cast %63 : vector<2x8xf32> to vector<2x8x1xf32>
    %65 = tpu.reciprocal %64 {approx = true} : vector<2x8x1xf32> -> vector<2x8x1xf32>
    %66 = vector.broadcast %65 : vector<2x8x1xf32> to vector<2x8x8xf32>
    %67 = arith.mulf %62, %66 : vector<2x8x8xf32>
    "tpu.trace_start"() <{level = 10 : i32, message = "bqk,bkd->bqd"}> : () -> ()
    %cst_56 = arith.constant dense<0.000000e+00> : vector<2x8x8xf32>
    %68 = tpu.matmul %67, %56, %cst_56 {dimension_numbers = #tpu.dot_dimension_numbers<[2], [1], [1], [2], [0, 0, 0, 1, 1, 2], [0], [0]>} : vector<2x8x8xf32>, vector<2x8x8xf32>, vector<2x8x8xf32> -> vector<2x8x8xf32>
    "tpu.trace_stop"() : () -> ()
    %c0_57 = arith.constant 0 : index
    %c0_58 = arith.constant 0 : index
    %c24_59 = arith.constant 24 : index
    %69 = vector.load %arg6[%c0_57, %c0_58, %c24_59] : memref<2x8x32xf32, #tpu.memory_space<vmem>>, vector<2x8x8xf32>
    tpu.vector_store %arg6[%c0_57, %c0_58, %c24_59], %68 {strides = array<i32>} : memref<2x8x32xf32, #tpu.memory_space<vmem>>, vector<2x8x8xf32>,
    %c0_60 = arith.constant 0 : index
    %c0_61 = arith.constant 0 : index
    %c0_62 = arith.constant 0 : index
    %70 = vector.load %arg6[%c0_60, %c0_61, %c0_62] : memref<2x8x32xf32, #tpu.memory_space<vmem>>, vector<2x8x32xf32>
    %71 = vector.shape_cast %70 : vector<2x8x32xf32> to vector<16x32xf32>
    %c0_63 = arith.constant 0 : index
    %c0_64 = arith.constant 0 : index
    %72 = vector.load %arg3[%c0_63, %c0_64] : memref<32x32xf32, #tpu.memory_space<vmem>>, vector<32x32xf32>
    %cst_65 = arith.constant dense<0.000000e+00> : vector<16x32xf32>
    %73 = tpu.matmul %71, %72, %cst_65 {dimension_numbers = #tpu.dot_dimension_numbers<[1], [0], [0], [1], [0, 0, 1, 1], [], []>} : vector<16x32xf32>, vector<32x32xf32>, vector<16x32xf32> -> vector<16x32xf32>
    %74 = vector.shape_cast %73 : vector<16x32xf32> to vector<2x8x32xf32>
    %c0_66 = arith.constant 0 : index
    %c0_67 = arith.constant 0 : index
    %c0_68 = arith.constant 0 : index
    %75 = vector.load %arg4[%c0_66, %c0_67, %c0_68] : memref<2x8x32xf32, #tpu.memory_space<vmem>>, vector<2x8x32xf32>
    tpu.vector_store %arg4[%c0_66, %c0_67, %c0_68], %74 {strides = array<i32>} : memref<2x8x32xf32, #tpu.memory_space<vmem>>, vector<2x8x32xf32>,
    return
  }
  func.func @transform_0(%arg0: i32) -> (i32, i32, i32) {
    %c0_i32 = arith.constant 0 : i32
    %c0_i32_0 = arith.constant 0 : i32
    %c0_i32_1 = arith.constant 0 : i32
    return %arg0, %c0_i32, %c0_i32_0 : i32, i32, i32
  }
  func.func @transform_1(%arg0: i32) -> (i32, i32) {
    %c0_i32 = arith.constant 0 : i32
    %c0_i32_0 = arith.constant 0 : i32
    %c0_i32_1 = arith.constant 0 : i32
    return %c0_i32, %c0_i32_0 : i32, i32
  }
  func.func @transform_2(%arg0: i32) -> (i32, i32) {
    %c0_i32 = arith.constant 0 : i32
    %c0_i32_0 = arith.constant 0 : i32
    %c0_i32_1 = arith.constant 0 : i32
    return %c0_i32, %c0_i32_0 : i32, i32
  }
  func.func @transform_3(%arg0: i32) -> (i32, i32, i32) {
    %c0_i32 = arith.constant 0 : i32
    %c0_i32_0 = arith.constant 0 : i32
    %c0_i32_1 = arith.constant 0 : i32
    return %arg0, %c0_i32, %c0_i32_0 : i32, i32, i32
  }
}

</mosaic_0001>

<llo_original>
// kernel: tpu_custom_call.1
$region0: #{tpu_custom_call.1}
  #allocation0 [shape = 'u32[]', space=smem, size = 0x4, offset = 0x4, fixed_abs, tag = 'smem constant byte address 0x4 - core index']
  #allocation1 [shape = 'u32[144,128]{1,0:T(1,128)}', space=vmem, size = 0x12000, scoped, tag = 'internal scratch']
  #allocation2 [shape = 'f32[2,8,96]{2,1,0:T(8,128)}', space=vmem, size = 0x2000, scoped, tag = 'scratch operand']
  #allocation3 [shape = 'f32[2,8,32]{2,1,0:T(8,128)}', space=vmem, size = 0x2000, scoped, tag = 'scratch operand']
  %s0 = inlined_call_operand.hbm [shape: f32[2,8,32], index: 0, kind: input, shape index: {}]
  %s1 = inlined_call_operand.hbm [shape: f32[32,96], index: 1, kind: input, shape index: {}]
  %s2 = inlined_call_operand.hbm [shape: f32[32,32], index: 2, kind: input, shape index: {}]
  %s3 = inlined_call_operand.hbm [shape: f32[2,8,32], index: 3, kind: output, shape index: {}]
  %s4 = sld [smem:[#allocation0]]
  $region34: #{tpu_custom_call.1} parent=0
    _
  %s6 = ssub.s32 1, %s4
  %s7 = scalar_select 0, %s6, %s4
  $region1: #{tpu_custom_call.1} parent=0
    #allocation4 [shape = 'u8[8192]{0}', space=vmem, size = 0x2000, scoped, tag = 'input window, operand 0, single buffered']
    #allocation5 [shape = 's32[1]{0}', space=sflag, size = 0x4, scoped, tag = 'scoped memory for tpu_custom_call.1']
    #allocation6 [shape = 's32[1]{0}', space=sflag, size = 0x4, scoped, tag = 'scoped memory for tpu_custom_call.1']
    #allocation7 [shape = 'u8[16384]{0}', space=vmem, size = 0x4000, scoped, tag = 'input window, operand 1, single buffered']
    #allocation8 [shape = 's32[1]{0}', space=sflag, size = 0x4, scoped, tag = 'scoped memory for tpu_custom_call.1']
    #allocation9 [shape = 'u8[16384]{0}', space=vmem, size = 0x4000, scoped, tag = 'input window, operand 2, single buffered']
    #allocation10 [shape = 'u8[8192]{0}', space=vmem, size = 0x2000, scoped, tag = 'output window, operand 0, single buffered']
    %8 = vsyncpa [#allocation5], 0
    %9 = vsyncpa [#allocation8], 0
    %10 = vsyncpa [#allocation6], 0
    // Predicated region
    $region2: #{tpu_custom_call.1} parent=1 // pred_check
      _
    $region3: #{tpu_custom_call.1} parent=1 // pred_check_branch
      %12 = sbr.rel (0) target = $region5
    $region4: #{tpu_custom_call.1} parent=1 // pred_region
      %s14 = ssub.s32 256, 256
      %15 = vsyncadd [#allocation5], %s14
      %s16 = sshll.u32 [#allocation4], 4
      %s17 = int_to_ptr.vmem [resolvable:$true] %s16
      %22 = dma.hbm_to_vmem [thread:$0]  %s0, 256, %s17, [#allocation5], 128, 128, 8
    $region5: #{tpu_custom_call.1} parent=1 // pred_fallthru
      _
    // Predicated region
    $region6: #{tpu_custom_call.1} parent=1 // pred_check
      _
    $region7: #{tpu_custom_call.1} parent=1 // pred_check_branch
      %24 = sbr.rel (0) target = $region9
    $region8: #{tpu_custom_call.1} parent=1 // pred_region
      %s26 = ssub.s32 512, 512
      %27 = vsyncadd [#allocation8], %s26
      %s28 = sshll.u32 [#allocation7], 4
      %s29 = int_to_ptr.vmem [resolvable:$true] %s28
      %34 = dma.hbm_to_vmem [thread:$0]  %s1, 512, %s29, [#allocation8], 128, 128, 8
    $region9: #{tpu_custom_call.1} parent=1 // pred_fallthru
      _
    // Predicated region
    $region10: #{tpu_custom_call.1} parent=1 // pred_check
      _
    $region11: #{tpu_custom_call.1} parent=1 // pred_check_branch
      %36 = sbr.rel (0) target = $region13
    $region12: #{tpu_custom_call.1} parent=1 // pred_region
      %s38 = ssub.s32 512, 512
      %39 = vsyncadd [#allocation8], %s38
      %s40 = sshll.u32 [#allocation9], 4
      %s41 = int_to_ptr.vmem [resolvable:$true] %s40
      %46 = dma.hbm_to_vmem [thread:$0]  %s2, 512, %s41, [#allocation8], 128, 128, 8
    $region13: #{tpu_custom_call.1} parent=1 // pred_fallthru
      _
    // Predicated region
    $region14: #{tpu_custom_call.1} parent=1 // pred_check
      _
    $region15: #{tpu_custom_call.1} parent=1 // pred_check_branch
      %48 = sbr.rel (0) target = $region17
    $region16: #{tpu_custom_call.1} parent=1 // pred_region
      %49 = dma.done [#allocation5], 256
    $region17: #{tpu_custom_call.1} parent=1 // pred_fallthru
      _
    // Predicated region
    $region18: #{tpu_custom_call.1} parent=1 // pred_check
      _
    $region19: #{tpu_custom_call.1} parent=1 // pred_check_branch
      %51 = sbr.rel (0) target = $region21
    $region20: #{tpu_custom_call.1} parent=1 // pred_region
      %52 = dma.done [#allocation8], 512
    $region21: #{tpu_custom_call.1} parent=1 // pred_fallthru
      _
    // Predicated region
    $region22: #{tpu_custom_call.1} parent=1 // pred_check
      _
    $region23: #{tpu_custom_call.1} parent=1 // pred_check_branch
      %54 = sbr.rel (0) target = $region25
    $region24: #{tpu_custom_call.1} parent=1 // pred_region
      %55 = dma.done [#allocation8], 512
    $region25: #{tpu_custom_call.1} parent=1 // pred_fallthru
      _
    %v56 = vld [vmem:[#allocation4] sm:$0xff]
    %v57 = vld [vmem:[#allocation4 + $0x8] sm:$0xff]
    %v58 = vld [vmem:[#allocation7] sm:$0xff]
    %v59 = vld [vmem:[#allocation7 + $0x8] sm:$0xff]
    %v60 = vld [vmem:[#allocation7 + $0x10] sm:$0xff]
    %v61 = vld [vmem:[#allocation7 + $0x18] sm:$0xff]
    %vm62 = vcmask 261120
    %v64 = vsel %vm62, %v56, 0
    %v67 = vsel %vm62, %v57, 0
    %69 = vmatprep.subr.mxu0 0.0
    %70 = vmatpush1.msra.mxu0 0.0
    %71 = vmatprep.subr.mxu0 0.0
    %72 = vmatpush1.msra.mxu0 0.0
    %73 = vmatprep.subr.mxu0 0.0
    %74 = vmatpush1.msra.mxu0 0.0
    %75 = vmatprep.subr.mxu0 0.0
    %76 = vmatpush1.msra.mxu0 0.0
    %77 = vmatprep.subr.mxu0 0.0
    %78 = vmatpush1.msra.mxu0 0.0
    %79 = vmatprep.subr.mxu0 0.0
    %80 = vmatpush1.msra.mxu0 0.0
    %81 = vmatprep.subr.mxu0 0.0
    %82 = vmatpush1.msra.mxu0 0.0
    %83 = vmatprep.subr.mxu0 0.0
    %84 = vmatpush1.msra.mxu0 0.0
    %85 = vmatprep.subr.mxu0 0.0
    %86 = vmatpush1.msra.mxu0 0.0
    %87 = vmatprep.subr.mxu0 0.0
    %88 = vmatpush1.msra.mxu0 0.0
    %89 = vmatprep.subr.mxu0 0.0
    %90 = vmatpush1.msra.mxu0 0.0
    %91 = vmatprep.subr.mxu0 0.0
    %92 = vmatpush1.msra.mxu0 0.0
    %93 = vmatprep.subr.mxu0 0.0
    %94 = vmatpush1.msra.mxu0 %v61
    %95 = vmatprep.subr.mxu0 0.0
    %96 = vmatpush1.msra.mxu0 %v60
    %97 = vmatprep.subr.mxu0 0.0
    %98 = vmatpush1.msra.mxu0 %v59
    %99 = vmatprep.subr.mxu0 0.0
    %100 = vmatpush1.msra.mxu0 %v58
    %101 = vmatprep.subr.mxu0 0.0
    %102 = vmatpush2.msra.mxu0 0.0
    %103 = vmatprep.subr.mxu0 0.0
    %104 = vmatpush2.msra.mxu0 0.0
    %105 = vmatprep.subr.mxu0 0.0
    %106 = vmatpush2.msra.mxu0 0.0
    %107 = vmatprep.subr.mxu0 0.0
    %108 = vmatpush2.msra.mxu0 0.0
    %109 = vmatprep.subr.mxu0 0.0
    %110 = vmatpush2.msra.mxu0 0.0
    %111 = vmatprep.subr.mxu0 0.0
    %112 = vmatpush2.msra.mxu0 0.0
    %113 = vmatprep.subr.mxu0 0.0
    %114 = vmatpush2.msra.mxu0 0.0
    %115 = vmatprep.subr.mxu0 0.0
    %116 = vmatpush2.msra.mxu0 0.0
    %117 = vmatprep.subr.mxu0 0.0
    %118 = vmatpush2.msra.mxu0 0.0
    %119 = vmatprep.subr.mxu0 0.0
    %120 = vmatpush2.msra.mxu0 0.0
    %121 = vmatprep.subr.mxu0 0.0
    %122 = vmatpush2.msra.mxu0 0.0
    %123 = vmatprep.subr.mxu0 0.0
    %124 = vmatpush2.msra.mxu0 0.0
    %125 = vmatprep.subr.mxu0 0.0
    %126 = vmatpush2.msra.mxu0 0.0
    %127 = vmatprep.subr.mxu0 0.0
    %128 = vmatpush2.msra.mxu0 0.0
    %129 = vmatprep.subr.mxu0 0.0
    %130 = vmatpush2.msra.mxu0 0.0
    %131 = vmatprep.subr.mxu0 0.0
    %132 = vmatpush2.msra.mxu0 0.0
    %133 = vmatprep.mubr.f32.mxu0 0.0
    %134 = vmatmul.mubr.f32.gmra.mxu0 %v64
    %v135 = vpop.f32.mrf.mxu0
    %v136 = vadd.f32 0.0, %v135
    %v137 = vpop.f32.mrf.mxu0
    %138 = vmatprep.mubr.f32.mxu0 0.0
    %139 = vmatmul.mubr.f32.gmra.mxu0 %v67
    %v140 = vpop.f32.mrf.mxu0
    %v141 = vadd.f32 0.0, %v140
    %v142 = vpop.f32.mrf.mxu0
    %143 = vdwg.mxu0
    %vm144 = vcmask 785408
    %145 = vst.msk [vmem:[#allocation2] sm:$0xff] %vm144, %v136
    %146 = vst.msk [vmem:[#allocation2 + $0x8] sm:$0xff] %vm144, %v141
    %v147 = vld [vmem:[#allocation2] sm:$0xff]
    %v148 = vld [vmem:[#allocation2 + $0x8] sm:$0xff]
    %150 = vrot.lane.b32.xlu0 %v147, 96
    %v151 = vpop.permute.xlu0 %150
    %vm152 = vcmask 64512
    %v153 = vsel %vm152, %v147, 0
    %v155 = vsel %vm152, %v151, 0
    %157 = vmatprep.subr.mxu0 0.0
    %158 = vmatpush1.xpose.msra.mxu0 0.0
    %159 = vmatprep.subr.mxu0 0.0
    %160 = vmatpush1.xpose.msra.mxu0 0.0
    %161 = vmatprep.subr.mxu0 0.0
    %162 = vmatpush1.xpose.msra.mxu0 0.0
    %163 = vmatprep.subr.mxu0 0.0
    %164 = vmatpush1.xpose.msra.mxu0 0.0
    %165 = vmatprep.subr.mxu0 0.0
    %166 = vmatpush1.xpose.msra.mxu0 0.0
    %167 = vmatprep.subr.mxu0 0.0
    %168 = vmatpush1.xpose.msra.mxu0 0.0
    %169 = vmatprep.subr.mxu0 0.0
    %170 = vmatpush1.xpose.msra.mxu0 0.0
    %171 = vmatprep.subr.mxu0 0.0
    %172 = vmatpush1.xpose.msra.mxu0 0.0
    %173 = vmatprep.subr.mxu0 0.0
    %174 = vmatpush1.xpose.msra.mxu0 0.0
    %175 = vmatprep.subr.mxu0 0.0
    %176 = vmatpush1.xpose.msra.mxu0 0.0
    %177 = vmatprep.subr.mxu0 0.0
    %178 = vmatpush1.xpose.msra.mxu0 0.0
    %179 = vmatprep.subr.mxu0 0.0
    %180 = vmatpush1.xpose.msra.mxu0 0.0
    %181 = vmatprep.subr.mxu0 0.0
    %182 = vmatpush1.xpose.msra.mxu0 0.0
    %183 = vmatprep.subr.mxu0 0.0
    %184 = vmatpush1.xpose.msra.mxu0 0.0
    %185 = vmatprep.subr.mxu0 0.0
    %186 = vmatpush1.xpose.msra.mxu0 0.0
    %187 = vmatprep.subr.mxu0 0.0
    %188 = vmatpush1.xpose.msra.mxu0 %v155
    %189 = vmatprep.subr.mxu0 0.0
    %190 = vmatpush2.xpose.msra.mxu0 0.0
    %191 = vmatprep.subr.mxu0 0.0
    %192 = vmatpush2.xpose.msra.mxu0 0.0
    %193 = vmatprep.subr.mxu0 0.0
    %194 = vmatpush2.xpose.msra.mxu0 0.0
    %195 = vmatprep.subr.mxu0 0.0
    %196 = vmatpush2.xpose.msra.mxu0 0.0
    %197 = vmatprep.subr.mxu0 0.0
    %198 = vmatpush2.xpose.msra.mxu0 0.0
    %199 = vmatprep.subr.mxu0 0.0
    %200 = vmatpush2.xpose.msra.mxu0 0.0
    %201 = vmatprep.subr.mxu0 0.0
    %202 = vmatpush2.xpose.msra.mxu0 0.0
    %203 = vmatprep.subr.mxu0 0.0
    %204 = vmatpush2.xpose.msra.mxu0 0.0
    %205 = vmatprep.subr.mxu0 0.0
    %206 = vmatpush2.xpose.msra.mxu0 0.0
    %207 = vmatprep.subr.mxu0 0.0
    %208 = vmatpush2.xpose.msra.mxu0 0.0
    %209 = vmatprep.subr.mxu0 0.0
    %210 = vmatpush2.xpose.msra.mxu0 0.0
    %211 = vmatprep.subr.mxu0 0.0
    %212 = vmatpush2.xpose.msra.mxu0 0.0
    %213 = vmatprep.subr.mxu0 0.0
    %214 = vmatpush2.xpose.msra.mxu0 0.0
    %215 = vmatprep.subr.mxu0 0.0
    %216 = vmatpush2.xpose.msra.mxu0 0.0
    %217 = vmatprep.subr.mxu0 0.0
    %218 = vmatpush2.xpose.msra.mxu0 0.0
    %219 = vmatprep.subr.mxu0 0.0
    %220 = vmatpush2.xpose.msra.mxu0 0.0
    %221 = vmatprep.mubr.f32.mxu0 0.0
    %222 = vmatmul.mubr.f32.gmra.mxu0 %v153
    %v223 = vpop.f32.mrf.mxu0
    %v224 = vadd.f32 0.0, %v223
    %v225 = vpop.f32.mrf.mxu0
    %226 = vdwg.mxu0
    %228 = vrot.lane.b32.xlu0 %v148, 96
    %v229 = vpop.permute.xlu0 %228
    %v230 = vsel %vm152, %v148, 0
    %v232 = vsel %vm152, %v229, 0
    %234 = vmatprep.subr.mxu0 0.0
    %235 = vmatpush1.xpose.msra.mxu0 0.0
    %236 = vmatprep.subr.mxu0 0.0
    %237 = vmatpush1.xpose.msra.mxu0 0.0
    %238 = vmatprep.subr.mxu0 0.0
    %239 = vmatpush1.xpose.msra.mxu0 0.0
    %240 = vmatprep.subr.mxu0 0.0
    %241 = vmatpush1.xpose.msra.mxu0 0.0
    %242 = vmatprep.subr.mxu0 0.0
    %243 = vmatpush1.xpose.msra.mxu0 0.0
    %244 = vmatprep.subr.mxu0 0.0
    %245 = vmatpush1.xpose.msra.mxu0 0.0
    %246 = vmatprep.subr.mxu0 0.0
    %247 = vmatpush1.xpose.msra.mxu0 0.0
    %248 = vmatprep.subr.mxu0 0.0
    %249 = vmatpush1.xpose.msra.mxu0 0.0
    %250 = vmatprep.subr.mxu0 0.0
    %251 = vmatpush1.xpose.msra.mxu0 0.0
    %252 = vmatprep.subr.mxu0 0.0
    %253 = vmatpush1.xpose.msra.mxu0 0.0
    %254 = vmatprep.subr.mxu0 0.0
    %255 = vmatpush1.xpose.msra.mxu0 0.0
    %256 = vmatprep.subr.mxu0 0.0
    %257 = vmatpush1.xpose.msra.mxu0 0.0
    %258 = vmatprep.subr.mxu0 0.0
    %259 = vmatpush1.xpose.msra.mxu0 0.0
    %260 = vmatprep.subr.mxu0 0.0
    %261 = vmatpush1.xpose.msra.mxu0 0.0
    %262 = vmatprep.subr.mxu0 0.0
    %263 = vmatpush1.xpose.msra.mxu0 0.0
    %264 = vmatprep.subr.mxu0 0.0
    %265 = vmatpush1.xpose.msra.mxu0 %v232
    %266 = vmatprep.subr.mxu0 0.0
    %267 = vmatpush2.xpose.msra.mxu0 0.0
    %268 = vmatprep.subr.mxu0 0.0
    %269 = vmatpush2.xpose.msra.mxu0 0.0
    %270 = vmatprep.subr.mxu0 0.0
    %271 = vmatpush2.xpose.msra.mxu0 0.0
    %272 = vmatprep.subr.mxu0 0.0
    %273 = vmatpush2.xpose.msra.mxu0 0.0
    %274 = vmatprep.subr.mxu0 0.0
    %275 = vmatpush2.xpose.msra.mxu0 0.0
    %276 = vmatprep.subr.mxu0 0.0
    %277 = vmatpush2.xpose.msra.mxu0 0.0
    %278 = vmatprep.subr.mxu0 0.0
    %279 = vmatpush2.xpose.msra.mxu0 0.0
    %280 = vmatprep.subr.mxu0 0.0
    %281 = vmatpush2.xpose.msra.mxu0 0.0
    %282 = vmatprep.subr.mxu0 0.0
    %283 = vmatpush2.xpose.msra.mxu0 0.0
    %284 = vmatprep.subr.mxu0 0.0
    %285 = vmatpush2.xpose.msra.mxu0 0.0
    %286 = vmatprep.subr.mxu0 0.0
    %287 = vmatpush2.xpose.msra.mxu0 0.0
    %288 = vmatprep.subr.mxu0 0.0
    %289 = vmatpush2.xpose.msra.mxu0 0.0
    %290 = vmatprep.subr.mxu0 0.0
    %291 = vmatpush2.xpose.msra.mxu0 0.0
    %292 = vmatprep.subr.mxu0 0.0
    %293 = vmatpush2.xpose.msra.mxu0 0.0
    %294 = vmatprep.subr.mxu0 0.0
    %295 = vmatpush2.xpose.msra.mxu0 0.0
    %296 = vmatprep.subr.mxu0 0.0
    %297 = vmatpush2.xpose.msra.mxu0 0.0
    %298 = vmatprep.mubr.f32.mxu0 0.0
    %299 = vmatmul.mubr.f32.gmra.mxu0 %v230
    %v300 = vpop.f32.mrf.mxu0
    %v301 = vadd.f32 0.0, %v300
    %v302 = vpop.f32.mrf.mxu0
    %303 = vdwg.mxu0
    %v304 = vsel %vm152, %v224, -inf
    %305 = vmax.xlane.f32.xlu0 %v304
    %v306 = vpop.xlane.xlu0 %305
    %v307 = vsel %vm152, %v301, -inf
    %308 = vmax.xlane.f32.xlu0 %v307
    %v309 = vpop.xlane.xlu0 %308
    %v310 = vsub.f32 %v224, %v306
    %v311 = vsub.f32 %v301, %v309
    %v312 = vmul.f32 %v310, 1.442695
    %v313 = vpow.pop %v312
    %v314 = vmul.f32 %v311, 1.442695
    %v315 = vpow.pop %v314
    %v316 = vsel %vm152, %v313, 0.0
    %317 = vadd.xlane.f32.xlu0 %v316
    %v318 = vpop.xlane.xlu0 %317
    %v319 = vsel %vm152, %v315, 0.0
    %320 = vadd.xlane.f32.xlu0 %v319
    %v321 = vpop.xlane.xlu0 %320
    %v322 = vrcp.pop %v318
    %v323 = vrcp.pop %v321
    %v324 = vmul.f32 %v313, %v322
    %v325 = vmul.f32 %v315, %v323
    %326 = vrot.lane.b32.xlu0 %v147, 64
    %v327 = vpop.permute.xlu0 %326
    %v330 = vsel %vm152, %v324, 0
    %332 = vmatprep.subr.mxu0 0.0
    %333 = vmatpush1.msra.mxu0 0.0
    %334 = vmatprep.subr.mxu0 0.0
    %335 = vmatpush1.msra.mxu0 0.0
    %336 = vmatprep.subr.mxu0 0.0
    %337 = vmatpush1.msra.mxu0 0.0
    %338 = vmatprep.subr.mxu0 0.0
    %339 = vmatpush1.msra.mxu0 0.0
    %340 = vmatprep.subr.mxu0 0.0
    %341 = vmatpush1.msra.mxu0 0.0
    %342 = vmatprep.subr.mxu0 0.0
    %343 = vmatpush1.msra.mxu0 0.0
    %344 = vmatprep.subr.mxu0 0.0
    %345 = vmatpush1.msra.mxu0 0.0
    %346 = vmatprep.subr.mxu0 0.0
    %347 = vmatpush1.msra.mxu0 0.0
    %348 = vmatprep.subr.mxu0 0.0
    %349 = vmatpush1.msra.mxu0 0.0
    %350 = vmatprep.subr.mxu0 0.0
    %351 = vmatpush1.msra.mxu0 0.0
    %352 = vmatprep.subr.mxu0 0.0
    %353 = vmatpush1.msra.mxu0 0.0
    %354 = vmatprep.subr.mxu0 0.0
    %355 = vmatpush1.msra.mxu0 0.0
    %356 = vmatprep.subr.mxu0 0.0
    %357 = vmatpush1.msra.mxu0 0.0
    %358 = vmatprep.subr.mxu0 0.0
    %359 = vmatpush1.msra.mxu0 0.0
    %360 = vmatprep.subr.mxu0 0.0
    %361 = vmatpush1.msra.mxu0 0.0
    %362 = vmatprep.subr.mxu0 0.0
    %363 = vmatpush1.msra.mxu0 %v327
    %364 = vmatprep.subr.mxu0 0.0
    %365 = vmatpush2.msra.mxu0 0.0
    %366 = vmatprep.subr.mxu0 0.0
    %367 = vmatpush2.msra.mxu0 0.0
    %368 = vmatprep.subr.mxu0 0.0
    %369 = vmatpush2.msra.mxu0 0.0
    %370 = vmatprep.subr.mxu0 0.0
    %371 = vmatpush2.msra.mxu0 0.0
    %372 = vmatprep.subr.mxu0 0.0
    %373 = vmatpush2.msra.mxu0 0.0
    %374 = vmatprep.subr.mxu0 0.0
    %375 = vmatpush2.msra.mxu0 0.0
    %376 = vmatprep.subr.mxu0 0.0
    %377 = vmatpush2.msra.mxu0 0.0
    %378 = vmatprep.subr.mxu0 0.0
    %379 = vmatpush2.msra.mxu0 0.0
    %380 = vmatprep.subr.mxu0 0.0
    %381 = vmatpush2.msra.mxu0 0.0
    %382 = vmatprep.subr.mxu0 0.0
    %383 = vmatpush2.msra.mxu0 0.0
    %384 = vmatprep.subr.mxu0 0.0
    %385 = vmatpush2.msra.mxu0 0.0
    %386 = vmatprep.subr.mxu0 0.0
    %387 = vmatpush2.msra.mxu0 0.0
    %388 = vmatprep.subr.mxu0 0.0
    %389 = vmatpush2.msra.mxu0 0.0
    %390 = vmatprep.subr.mxu0 0.0
    %391 = vmatpush2.msra.mxu0 0.0
    %392 = vmatprep.subr.mxu0 0.0
    %393 = vmatpush2.msra.mxu0 0.0
    %394 = vmatprep.subr.mxu0 0.0
    %395 = vmatpush2.msra.mxu0 0.0
    %396 = vmatprep.mubr.f32.mxu0 0.0
    %397 = vmatmul.mubr.f32.gmra.mxu0 %v330
    %v398 = vpop.f32.mrf.mxu0
    %v399 = vadd.f32 0.0, %v398
    %v400 = vpop.f32.mrf.mxu0
    %401 = vdwg.mxu0
    %402 = vrot.lane.b32.xlu0 %v148, 64
    %v403 = vpop.permute.xlu0 %402
    %v406 = vsel %vm152, %v325, 0
    %408 = vmatprep.subr.mxu0 0.0
    %409 = vmatpush1.msra.mxu0 0.0
    %410 = vmatprep.subr.mxu0 0.0
    %411 = vmatpush1.msra.mxu0 0.0
    %412 = vmatprep.subr.mxu0 0.0
    %413 = vmatpush1.msra.mxu0 0.0
    %414 = vmatprep.subr.mxu0 0.0
    %415 = vmatpush1.msra.mxu0 0.0
    %416 = vmatprep.subr.mxu0 0.0
    %417 = vmatpush1.msra.mxu0 0.0
    %418 = vmatprep.subr.mxu0 0.0
    %419 = vmatpush1.msra.mxu0 0.0
    %420 = vmatprep.subr.mxu0 0.0
    %421 = vmatpush1.msra.mxu0 0.0
    %422 = vmatprep.subr.mxu0 0.0
    %423 = vmatpush1.msra.mxu0 0.0
    %424 = vmatprep.subr.mxu0 0.0
    %425 = vmatpush1.msra.mxu0 0.0
    %426 = vmatprep.subr.mxu0 0.0
    %427 = vmatpush1.msra.mxu0 0.0
    %428 = vmatprep.subr.mxu0 0.0
    %429 = vmatpush1.msra.mxu0 0.0
    %430 = vmatprep.subr.mxu0 0.0
    %431 = vmatpush1.msra.mxu0 0.0
    %432 = vmatprep.subr.mxu0 0.0
    %433 = vmatpush1.msra.mxu0 0.0
    %434 = vmatprep.subr.mxu0 0.0
    %435 = vmatpush1.msra.mxu0 0.0
    %436 = vmatprep.subr.mxu0 0.0
    %437 = vmatpush1.msra.mxu0 0.0
    %438 = vmatprep.subr.mxu0 0.0
    %439 = vmatpush1.msra.mxu0 %v403
    %440 = vmatprep.subr.mxu0 0.0
    %441 = vmatpush2.msra.mxu0 0.0
    %442 = vmatprep.subr.mxu0 0.0
    %443 = vmatpush2.msra.mxu0 0.0
    %444 = vmatprep.subr.mxu0 0.0
    %445 = vmatpush2.msra.mxu0 0.0
    %446 = vmatprep.subr.mxu0 0.0
    %447 = vmatpush2.msra.mxu0 0.0
    %448 = vmatprep.subr.mxu0 0.0
    %449 = vmatpush2.msra.mxu0 0.0
    %450 = vmatprep.subr.mxu0 0.0
    %451 = vmatpush2.msra.mxu0 0.0
    %452 = vmatprep.subr.mxu0 0.0
    %453 = vmatpush2.msra.mxu0 0.0
    %454 = vmatprep.subr.mxu0 0.0
    %455 = vmatpush2.msra.mxu0 0.0
    %456 = vmatprep.subr.mxu0 0.0
    %457 = vmatpush2.msra.mxu0 0.0
    %458 = vmatprep.subr.mxu0 0.0
    %459 = vmatpush2.msra.mxu0 0.0
    %460 = vmatprep.subr.mxu0 0.0
    %461 = vmatpush2.msra.mxu0 0.0
    %462 = vmatprep.subr.mxu0 0.0
    %463 = vmatpush2.msra.mxu0 0.0
    %464 = vmatprep.subr.mxu0 0.0
    %465 = vmatpush2.msra.mxu0 0.0
    %466 = vmatprep.subr.mxu0 0.0
    %467 = vmatpush2.msra.mxu0 0.0
    %468 = vmatprep.subr.mxu0 0.0
    %469 = vmatpush2.msra.mxu0 0.0
    %470 = vmatprep.subr.mxu0 0.0
    %471 = vmatpush2.msra.mxu0 0.0
    %472 = vmatprep.mubr.f32.mxu0 0.0
    %473 = vmatmul.mubr.f32.gmra.mxu0 %v406
    %v474 = vpop.f32.mrf.mxu0
    %v475 = vadd.f32 0.0, %v474
    %v476 = vpop.f32.mrf.mxu0
    %477 = vdwg.mxu0
    %478 = vst.msk [vmem:[#allocation3] sm:$0xff] %vm152, %v399
    %479 = vst.msk [vmem:[#allocation3 + $0x8] sm:$0xff] %vm152, %v475
    %v480 = vld [vmem:[#allocation2] sm:$0xff]
    %v481 = vld [vmem:[#allocation2 + $0x8] sm:$0xff]
    %483 = vrot.lane.b32.xlu0 %v480, 120
    %v484 = vpop.permute.xlu0 %483
    %485 = vrot.lane.b32.xlu0 %v480, 88
    %v486 = vpop.permute.xlu0 %485
    %v487 = vsel %vm152, %v484, 0
    %v489 = vsel %vm152, %v486, 0
    %491 = vmatprep.subr.mxu0 0.0
    %492 = vmatpush1.xpose.msra.mxu0 0.0
    %493 = vmatprep.subr.mxu0 0.0
    %494 = vmatpush1.xpose.msra.mxu0 0.0
    %495 = vmatprep.subr.mxu0 0.0
    %496 = vmatpush1.xpose.msra.mxu0 0.0
    %497 = vmatprep.subr.mxu0 0.0
    %498 = vmatpush1.xpose.msra.mxu0 0.0
    %499 = vmatprep.subr.mxu0 0.0
    %500 = vmatpush1.xpose.msra.mxu0 0.0
    %501 = vmatprep.subr.mxu0 0.0
    %502 = vmatpush1.xpose.msra.mxu0 0.0
    %503 = vmatprep.subr.mxu0 0.0
    %504 = vmatpush1.xpose.msra.mxu0 0.0
    %505 = vmatprep.subr.mxu0 0.0
    %506 = vmatpush1.xpose.msra.mxu0 0.0
    %507 = vmatprep.subr.mxu0 0.0
    %508 = vmatpush1.xpose.msra.mxu0 0.0
    %509 = vmatprep.subr.mxu0 0.0
    %510 = vmatpush1.xpose.msra.mxu0 0.0
    %511 = vmatprep.subr.mxu0 0.0
    %512 = vmatpush1.xpose.msra.mxu0 0.0
    %513 = vmatprep.subr.mxu0 0.0
    %514 = vmatpush1.xpose.msra.mxu0 0.0
    %515 = vmatprep.subr.mxu0 0.0
    %516 = vmatpush1.xpose.msra.mxu0 0.0
    %517 = vmatprep.subr.mxu0 0.0
    %518 = vmatpush1.xpose.msra.mxu0 0.0
    %519 = vmatprep.subr.mxu0 0.0
    %520 = vmatpush1.xpose.msra.mxu0 0.0
    %521 = vmatprep.subr.mxu0 0.0
    %522 = vmatpush1.xpose.msra.mxu0 %v489
    %523 = vmatprep.subr.mxu0 0.0
    %524 = vmatpush2.xpose.msra.mxu0 0.0
    %525 = vmatprep.subr.mxu0 0.0
    %526 = vmatpush2.xpose.msra.mxu0 0.0
    %527 = vmatprep.subr.mxu0 0.0
    %528 = vmatpush2.xpose.msra.mxu0 0.0
    %529 = vmatprep.subr.mxu0 0.0
    %530 = vmatpush2.xpose.msra.mxu0 0.0
    %531 = vmatprep.subr.mxu0 0.0
    %532 = vmatpush2.xpose.msra.mxu0 0.0
    %533 = vmatprep.subr.mxu0 0.0
    %534 = vmatpush2.xpose.msra.mxu0 0.0
    %535 = vmatprep.subr.mxu0 0.0
    %536 = vmatpush2.xpose.msra.mxu0 0.0
    %537 = vmatprep.subr.mxu0 0.0
    %538 = vmatpush2.xpose.msra.mxu0 0.0
    %539 = vmatprep.subr.mxu0 0.0
    %540 = vmatpush2.xpose.msra.mxu0 0.0
    %541 = vmatprep.subr.mxu0 0.0
    %542 = vmatpush2.xpose.msra.mxu0 0.0
    %543 = vmatprep.subr.mxu0 0.0
    %544 = vmatpush2.xpose.msra.mxu0 0.0
    %545 = vmatprep.subr.mxu0 0.0
    %546 = vmatpush2.xpose.msra.mxu0 0.0
    %547 = vmatprep.subr.mxu0 0.0
    %548 = vmatpush2.xpose.msra.mxu0 0.0
    %549 = vmatprep.subr.mxu0 0.0
    %550 = vmatpush2.xpose.msra.mxu0 0.0
    %551 = vmatprep.subr.mxu0 0.0
    %552 = vmatpush2.xpose.msra.mxu0 0.0
    %553 = vmatprep.subr.mxu0 0.0
    %554 = vmatpush2.xpose.msra.mxu0 0.0
    %555 = vmatprep.mubr.f32.mxu0 0.0
    %556 = vmatmul.mubr.f32.gmra.mxu0 %v487
    %v557 = vpop.f32.mrf.mxu0
    %v558 = vadd.f32 0.0, %v557
    %v559 = vpop.f32.mrf.mxu0
    %560 = vdwg.mxu0
    %562 = vrot.lane.b32.xlu0 %v481, 120
    %v563 = vpop.permute.xlu0 %562
    %564 = vrot.lane.b32.xlu0 %v481, 88
    %v565 = vpop.permute.xlu0 %564
    %v566 = vsel %vm152, %v563, 0
    %v568 = vsel %vm152, %v565, 0
    %570 = vmatprep.subr.mxu0 0.0
    %571 = vmatpush1.xpose.msra.mxu0 0.0
    %572 = vmatprep.subr.mxu0 0.0
    %573 = vmatpush1.xpose.msra.mxu0 0.0
    %574 = vmatprep.subr.mxu0 0.0
    %575 = vmatpush1.xpose.msra.mxu0 0.0
    %576 = vmatprep.subr.mxu0 0.0
    %577 = vmatpush1.xpose.msra.mxu0 0.0
    %578 = vmatprep.subr.mxu0 0.0
    %579 = vmatpush1.xpose.msra.mxu0 0.0
    %580 = vmatprep.subr.mxu0 0.0
    %581 = vmatpush1.xpose.msra.mxu0 0.0
    %582 = vmatprep.subr.mxu0 0.0
    %583 = vmatpush1.xpose.msra.mxu0 0.0
    %584 = vmatprep.subr.mxu0 0.0
    %585 = vmatpush1.xpose.msra.mxu0 0.0
    %586 = vmatprep.subr.mxu0 0.0
    %587 = vmatpush1.xpose.msra.mxu0 0.0
    %588 = vmatprep.subr.mxu0 0.0
    %589 = vmatpush1.xpose.msra.mxu0 0.0
    %590 = vmatprep.subr.mxu0 0.0
    %591 = vmatpush1.xpose.msra.mxu0 0.0
    %592 = vmatprep.subr.mxu0 0.0
    %593 = vmatpush1.xpose.msra.mxu0 0.0
    %594 = vmatprep.subr.mxu0 0.0
    %595 = vmatpush1.xpose.msra.mxu0 0.0
    %596 = vmatprep.subr.mxu0 0.0
    %597 = vmatpush1.xpose.msra.mxu0 0.0
    %598 = vmatprep.subr.mxu0 0.0
    %599 = vmatpush1.xpose.msra.mxu0 0.0
    %600 = vmatprep.subr.mxu0 0.0
    %601 = vmatpush1.xpose.msra.mxu0 %v568
    %602 = vmatprep.subr.mxu0 0.0
    %603 = vmatpush2.xpose.msra.mxu0 0.0
    %604 = vmatprep.subr.mxu0 0.0
    %605 = vmatpush2.xpose.msra.mxu0 0.0
    %606 = vmatprep.subr.mxu0 0.0
    %607 = vmatpush2.xpose.msra.mxu0 0.0
    %608 = vmatprep.subr.mxu0 0.0
    %609 = vmatpush2.xpose.msra.mxu0 0.0
    %610 = vmatprep.subr.mxu0 0.0
    %611 = vmatpush2.xpose.msra.mxu0 0.0
    %612 = vmatprep.subr.mxu0 0.0
    %613 = vmatpush2.xpose.msra.mxu0 0.0
    %614 = vmatprep.subr.mxu0 0.0
    %615 = vmatpush2.xpose.msra.mxu0 0.0
    %616 = vmatprep.subr.mxu0 0.0
    %617 = vmatpush2.xpose.msra.mxu0 0.0
    %618 = vmatprep.subr.mxu0 0.0
    %619 = vmatpush2.xpose.msra.mxu0 0.0
    %620 = vmatprep.subr.mxu0 0.0
    %621 = vmatpush2.xpose.msra.mxu0 0.0
    %622 = vmatprep.subr.mxu0 0.0
    %623 = vmatpush2.xpose.msra.mxu0 0.0
    %624 = vmatprep.subr.mxu0 0.0
    %625 = vmatpush2.xpose.msra.mxu0 0.0
    %626 = vmatprep.subr.mxu0 0.0
    %627 = vmatpush2.xpose.msra.mxu0 0.0
    %628 = vmatprep.subr.mxu0 0.0
    %629 = vmatpush2.xpose.msra.mxu0 0.0
    %630 = vmatprep.subr.mxu0 0.0
    %631 = vmatpush2.xpose.msra.mxu0 0.0
    %632 = vmatprep.subr.mxu0 0.0
    %633 = vmatpush2.xpose.msra.mxu0 0.0
    %634 = vmatprep.mubr.f32.mxu0 0.0
    %635 = vmatmul.mubr.f32.gmra.mxu0 %v566
    %v636 = vpop.f32.mrf.mxu0
    %v637 = vadd.f32 0.0, %v636
    %v638 = vpop.f32.mrf.mxu0
    %639 = vdwg.mxu0
    %v640 = vsel %vm152, %v558, -inf
    %641 = vmax.xlane.f32.xlu0 %v640
    %v642 = vpop.xlane.xlu0 %641
    %v643 = vsel %vm152, %v637, -inf
    %644 = vmax.xlane.f32.xlu0 %v643
    %v645 = vpop.xlane.xlu0 %644
    %v646 = vsub.f32 %v558, %v642
    %v647 = vsub.f32 %v637, %v645
    %v648 = vmul.f32 %v646, 1.442695
    %v649 = vpow.pop %v648
    %v650 = vmul.f32 %v647, 1.442695
    %v651 = vpow.pop %v650
    %v652 = vsel %vm152, %v649, 0.0
    %653 = vadd.xlane.f32.xlu0 %v652
    %v654 = vpop.xlane.xlu0 %653
    %v655 = vsel %vm152, %v651, 0.0
    %656 = vadd.xlane.f32.xlu0 %v655
    %v657 = vpop.xlane.xlu0 %656
    %v658 = vrcp.pop %v654
    %v659 = vrcp.pop %v657
    %v660 = vmul.f32 %v649, %v658
    %v661 = vmul.f32 %v651, %v659
    %662 = vrot.lane.b32.xlu0 %v480, 56
    %v663 = vpop.permute.xlu0 %662
    %v666 = vsel %vm152, %v660, 0
    %668 = vmatprep.subr.mxu0 0.0
    %669 = vmatpush1.msra.mxu0 0.0
    %670 = vmatprep.subr.mxu0 0.0
    %671 = vmatpush1.msra.mxu0 0.0
    %672 = vmatprep.subr.mxu0 0.0
    %673 = vmatpush1.msra.mxu0 0.0
    %674 = vmatprep.subr.mxu0 0.0
    %675 = vmatpush1.msra.mxu0 0.0
    %676 = vmatprep.subr.mxu0 0.0
    %677 = vmatpush1.msra.mxu0 0.0
    %678 = vmatprep.subr.mxu0 0.0
    %679 = vmatpush1.msra.mxu0 0.0
    %680 = vmatprep.subr.mxu0 0.0
    %681 = vmatpush1.msra.mxu0 0.0
    %682 = vmatprep.subr.mxu0 0.0
    %683 = vmatpush1.msra.mxu0 0.0
    %684 = vmatprep.subr.mxu0 0.0
    %685 = vmatpush1.msra.mxu0 0.0
    %686 = vmatprep.subr.mxu0 0.0
    %687 = vmatpush1.msra.mxu0 0.0
    %688 = vmatprep.subr.mxu0 0.0
    %689 = vmatpush1.msra.mxu0 0.0
    %690 = vmatprep.subr.mxu0 0.0
    %691 = vmatpush1.msra.mxu0 0.0
    %692 = vmatprep.subr.mxu0 0.0
    %693 = vmatpush1.msra.mxu0 0.0
    %694 = vmatprep.subr.mxu0 0.0
    %695 = vmatpush1.msra.mxu0 0.0
    %696 = vmatprep.subr.mxu0 0.0
    %697 = vmatpush1.msra.mxu0 0.0
    %698 = vmatprep.subr.mxu0 0.0
    %699 = vmatpush1.msra.mxu0 %v663
    %700 = vmatprep.subr.mxu0 0.0
    %701 = vmatpush2.msra.mxu0 0.0
    %702 = vmatprep.subr.mxu0 0.0
    %703 = vmatpush2.msra.mxu0 0.0
    %704 = vmatprep.subr.mxu0 0.0
    %705 = vmatpush2.msra.mxu0 0.0
    %706 = vmatprep.subr.mxu0 0.0
    %707 = vmatpush2.msra.mxu0 0.0
    %708 = vmatprep.subr.mxu0 0.0
    %709 = vmatpush2.msra.mxu0 0.0
    %710 = vmatprep.subr.mxu0 0.0
    %711 = vmatpush2.msra.mxu0 0.0
    %712 = vmatprep.subr.mxu0 0.0
    %713 = vmatpush2.msra.mxu0 0.0
    %714 = vmatprep.subr.mxu0 0.0
    %715 = vmatpush2.msra.mxu0 0.0
    %716 = vmatprep.subr.mxu0 0.0
    %717 = vmatpush2.msra.mxu0 0.0
    %718 = vmatprep.subr.mxu0 0.0
    %719 = vmatpush2.msra.mxu0 0.0
    %720 = vmatprep.subr.mxu0 0.0
    %721 = vmatpush2.msra.mxu0 0.0
    %722 = vmatprep.subr.mxu0 0.0
    %723 = vmatpush2.msra.mxu0 0.0
    %724 = vmatprep.subr.mxu0 0.0
    %725 = vmatpush2.msra.mxu0 0.0
    %726 = vmatprep.subr.mxu0 0.0
    %727 = vmatpush2.msra.mxu0 0.0
    %728 = vmatprep.subr.mxu0 0.0
    %729 = vmatpush2.msra.mxu0 0.0
    %730 = vmatprep.subr.mxu0 0.0
    %731 = vmatpush2.msra.mxu0 0.0
    %732 = vmatprep.mubr.f32.mxu0 0.0
    %733 = vmatmul.mubr.f32.gmra.mxu0 %v666
    %v734 = vpop.f32.mrf.mxu0
    %v735 = vadd.f32 0.0, %v734
    %v736 = vpop.f32.mrf.mxu0
    %737 = vdwg.mxu0
    %738 = vrot.lane.b32.xlu0 %v481, 56
    %v739 = vpop.permute.xlu0 %738
    %v742 = vsel %vm152, %v661, 0
    %744 = vmatprep.subr.mxu0 0.0
    %745 = vmatpush1.msra.mxu0 0.0
    %746 = vmatprep.subr.mxu0 0.0
    %747 = vmatpush1.msra.mxu0 0.0
    %748 = vmatprep.subr.mxu0 0.0
    %749 = vmatpush1.msra.mxu0 0.0
    %750 = vmatprep.subr.mxu0 0.0
    %751 = vmatpush1.msra.mxu0 0.0
    %752 = vmatprep.subr.mxu0 0.0
    %753 = vmatpush1.msra.mxu0 0.0
    %754 = vmatprep.subr.mxu0 0.0
    %755 = vmatpush1.msra.mxu0 0.0
    %756 = vmatprep.subr.mxu0 0.0
    %757 = vmatpush1.msra.mxu0 0.0
    %758 = vmatprep.subr.mxu0 0.0
    %759 = vmatpush1.msra.mxu0 0.0
    %760 = vmatprep.subr.mxu0 0.0
    %761 = vmatpush1.msra.mxu0 0.0
    %762 = vmatprep.subr.mxu0 0.0
    %763 = vmatpush1.msra.mxu0 0.0
    %764 = vmatprep.subr.mxu0 0.0
    %765 = vmatpush1.msra.mxu0 0.0
    %766 = vmatprep.subr.mxu0 0.0
    %767 = vmatpush1.msra.mxu0 0.0
    %768 = vmatprep.subr.mxu0 0.0
    %769 = vmatpush1.msra.mxu0 0.0
    %770 = vmatprep.subr.mxu0 0.0
    %771 = vmatpush1.msra.mxu0 0.0
    %772 = vmatprep.subr.mxu0 0.0
    %773 = vmatpush1.msra.mxu0 0.0
    %774 = vmatprep.subr.mxu0 0.0
    %775 = vmatpush1.msra.mxu0 %v739
    %776 = vmatprep.subr.mxu0 0.0
    %777 = vmatpush2.msra.mxu0 0.0
    %778 = vmatprep.subr.mxu0 0.0
    %779 = vmatpush2.msra.mxu0 0.0
    %780 = vmatprep.subr.mxu0 0.0
    %781 = vmatpush2.msra.mxu0 0.0
    %782 = vmatprep.subr.mxu0 0.0
    %783 = vmatpush2.msra.mxu0 0.0
    %784 = vmatprep.subr.mxu0 0.0
    %785 = vmatpush2.msra.mxu0 0.0
    %786 = vmatprep.subr.mxu0 0.0
    %787 = vmatpush2.msra.mxu0 0.0
    %788 = vmatprep.subr.mxu0 0.0
    %789 = vmatpush2.msra.mxu0 0.0
    %790 = vmatprep.subr.mxu0 0.0
    %791 = vmatpush2.msra.mxu0 0.0
    %792 = vmatprep.subr.mxu0 0.0
    %793 = vmatpush2.msra.mxu0 0.0
    %794 = vmatprep.subr.mxu0 0.0
    %795 = vmatpush2.msra.mxu0 0.0
    %796 = vmatprep.subr.mxu0 0.0
    %797 = vmatpush2.msra.mxu0 0.0
    %798 = vmatprep.subr.mxu0 0.0
    %799 = vmatpush2.msra.mxu0 0.0
    %800 = vmatprep.subr.mxu0 0.0
    %801 = vmatpush2.msra.mxu0 0.0
    %802 = vmatprep.subr.mxu0 0.0
    %803 = vmatpush2.msra.mxu0 0.0
    %804 = vmatprep.subr.mxu0 0.0
    %805 = vmatpush2.msra.mxu0 0.0
    %806 = vmatprep.subr.mxu0 0.0
    %807 = vmatpush2.msra.mxu0 0.0
    %808 = vmatprep.mubr.f32.mxu0 0.0
    %809 = vmatmul.mubr.f32.gmra.mxu0 %v742
    %v810 = vpop.f32.mrf.mxu0
    %v811 = vadd.f32 0.0, %v810
    %v812 = vpop.f32.mrf.mxu0
    %813 = vdwg.mxu0
    %816 = vrot.lane.b32.xlu0 %v735, 8
    %v817 = vpop.permute.xlu0 %816
    %818 = vrot.lane.b32.xlu0 %v811, 8
    %v819 = vpop.permute.xlu0 %818
    %vm822 = vcmask 130112
    %823 = vst.msk [vmem:[#allocation3] sm:$0xff] %vm822, %v817
    %824 = vst.msk [vmem:[#allocation3 + $0x8] sm:$0xff] %vm822, %v819
    %v825 = vld [vmem:[#allocation2] sm:$0xff]
    %v826 = vld [vmem:[#allocation2 + $0x8] sm:$0xff]
    %828 = vrot.lane.b32.xlu0 %v825, 112
    %v829 = vpop.permute.xlu0 %828
    %830 = vrot.lane.b32.xlu0 %v825, 80
    %v831 = vpop.permute.xlu0 %830
    %v832 = vsel %vm152, %v829, 0
    %v834 = vsel %vm152, %v831, 0
    %836 = vmatprep.subr.mxu0 0.0
    %837 = vmatpush1.xpose.msra.mxu0 0.0
    %838 = vmatprep.subr.mxu0 0.0
    %839 = vmatpush1.xpose.msra.mxu0 0.0
    %840 = vmatprep.subr.mxu0 0.0
    %841 = vmatpush1.xpose.msra.mxu0 0.0
    %842 = vmatprep.subr.mxu0 0.0
    %843 = vmatpush1.xpose.msra.mxu0 0.0
    %844 = vmatprep.subr.mxu0 0.0
    %845 = vmatpush1.xpose.msra.mxu0 0.0
    %846 = vmatprep.subr.mxu0 0.0
    %847 = vmatpush1.xpose.msra.mxu0 0.0
    %848 = vmatprep.subr.mxu0 0.0
    %849 = vmatpush1.xpose.msra.mxu0 0.0
    %850 = vmatprep.subr.mxu0 0.0
    %851 = vmatpush1.xpose.msra.mxu0 0.0
    %852 = vmatprep.subr.mxu0 0.0
    %853 = vmatpush1.xpose.msra.mxu0 0.0
    %854 = vmatprep.subr.mxu0 0.0
    %855 = vmatpush1.xpose.msra.mxu0 0.0
    %856 = vmatprep.subr.mxu0 0.0
    %857 = vmatpush1.xpose.msra.mxu0 0.0
    %858 = vmatprep.subr.mxu0 0.0
    %859 = vmatpush1.xpose.msra.mxu0 0.0
    %860 = vmatprep.subr.mxu0 0.0
    %861 = vmatpush1.xpose.msra.mxu0 0.0
    %862 = vmatprep.subr.mxu0 0.0
    %863 = vmatpush1.xpose.msra.mxu0 0.0
    %864 = vmatprep.subr.mxu0 0.0
    %865 = vmatpush1.xpose.msra.mxu0 0.0
    %866 = vmatprep.subr.mxu0 0.0
    %867 = vmatpush1.xpose.msra.mxu0 %v834
    %868 = vmatprep.subr.mxu0 0.0
    %869 = vmatpush2.xpose.msra.mxu0 0.0
    %870 = vmatprep.subr.mxu0 0.0
    %871 = vmatpush2.xpose.msra.mxu0 0.0
    %872 = vmatprep.subr.mxu0 0.0
    %873 = vmatpush2.xpose.msra.mxu0 0.0
    %874 = vmatprep.subr.mxu0 0.0
    %875 = vmatpush2.xpose.msra.mxu0 0.0
    %876 = vmatprep.subr.mxu0 0.0
    %877 = vmatpush2.xpose.msra.mxu0 0.0
    %878 = vmatprep.subr.mxu0 0.0
    %879 = vmatpush2.xpose.msra.mxu0 0.0
    %880 = vmatprep.subr.mxu0 0.0
    %881 = vmatpush2.xpose.msra.mxu0 0.0
    %882 = vmatprep.subr.mxu0 0.0
    %883 = vmatpush2.xpose.msra.mxu0 0.0
    %884 = vmatprep.subr.mxu0 0.0
    %885 = vmatpush2.xpose.msra.mxu0 0.0
    %886 = vmatprep.subr.mxu0 0.0
    %887 = vmatpush2.xpose.msra.mxu0 0.0
    %888 = vmatprep.subr.mxu0 0.0
    %889 = vmatpush2.xpose.msra.mxu0 0.0
    %890 = vmatprep.subr.mxu0 0.0
    %891 = vmatpush2.xpose.msra.mxu0 0.0
    %892 = vmatprep.subr.mxu0 0.0
    %893 = vmatpush2.xpose.msra.mxu0 0.0
    %894 = vmatprep.subr.mxu0 0.0
    %895 = vmatpush2.xpose.msra.mxu0 0.0
    %896 = vmatprep.subr.mxu0 0.0
    %897 = vmatpush2.xpose.msra.mxu0 0.0
    %898 = vmatprep.subr.mxu0 0.0
    %899 = vmatpush2.xpose.msra.mxu0 0.0
    %900 = vmatprep.mubr.f32.mxu0 0.0
    %901 = vmatmul.mubr.f32.gmra.mxu0 %v832
    %v902 = vpop.f32.mrf.mxu0
    %v903 = vadd.f32 0.0, %v902
    %v904 = vpop.f32.mrf.mxu0
    %905 = vdwg.mxu0
    %907 = vrot.lane.b32.xlu0 %v826, 112
    %v908 = vpop.permute.xlu0 %907
    %909 = vrot.lane.b32.xlu0 %v826, 80
    %v910 = vpop.permute.xlu0 %909
    %v911 = vsel %vm152, %v908, 0
    %v913 = vsel %vm152, %v910, 0
    %915 = vmatprep.subr.mxu0 0.0
    %916 = vmatpush1.xpose.msra.mxu0 0.0
    %917 = vmatprep.subr.mxu0 0.0
    %918 = vmatpush1.xpose.msra.mxu0 0.0
    %919 = vmatprep.subr.mxu0 0.0
    %920 = vmatpush1.xpose.msra.mxu0 0.0
    %921 = vmatprep.subr.mxu0 0.0
    %922 = vmatpush1.xpose.msra.mxu0 0.0
    %923 = vmatprep.subr.mxu0 0.0
    %924 = vmatpush1.xpose.msra.mxu0 0.0
    %925 = vmatprep.subr.mxu0 0.0
    %926 = vmatpush1.xpose.msra.mxu0 0.0
    %927 = vmatprep.subr.mxu0 0.0
    %928 = vmatpush1.xpose.msra.mxu0 0.0
    %929 = vmatprep.subr.mxu0 0.0
    %930 = vmatpush1.xpose.msra.mxu0 0.0
    %931 = vmatprep.subr.mxu0 0.0
    %932 = vmatpush1.xpose.msra.mxu0 0.0
    %933 = vmatprep.subr.mxu0 0.0
    %934 = vmatpush1.xpose.msra.mxu0 0.0
    %935 = vmatprep.subr.mxu0 0.0
    %936 = vmatpush1.xpose.msra.mxu0 0.0
    %937 = vmatprep.subr.mxu0 0.0
    %938 = vmatpush1.xpose.msra.mxu0 0.0
    %939 = vmatprep.subr.mxu0 0.0
    %940 = vmatpush1.xpose.msra.mxu0 0.0
    %941 = vmatprep.subr.mxu0 0.0
    %942 = vmatpush1.xpose.msra.mxu0 0.0
    %943 = vmatprep.subr.mxu0 0.0
    %944 = vmatpush1.xpose.msra.mxu0 0.0
    %945 = vmatprep.subr.mxu0 0.0
    %946 = vmatpush1.xpose.msra.mxu0 %v913
    %947 = vmatprep.subr.mxu0 0.0
    %948 = vmatpush2.xpose.msra.mxu0 0.0
    %949 = vmatprep.subr.mxu0 0.0
    %950 = vmatpush2.xpose.msra.mxu0 0.0
    %951 = vmatprep.subr.mxu0 0.0
    %952 = vmatpush2.xpose.msra.mxu0 0.0
    %953 = vmatprep.subr.mxu0 0.0
    %954 = vmatpush2.xpose.msra.mxu0 0.0
    %955 = vmatprep.subr.mxu0 0.0
    %956 = vmatpush2.xpose.msra.mxu0 0.0
    %957 = vmatprep.subr.mxu0 0.0
    %958 = vmatpush2.xpose.msra.mxu0 0.0
    %959 = vmatprep.subr.mxu0 0.0
    %960 = vmatpush2.xpose.msra.mxu0 0.0
    %961 = vmatprep.subr.mxu0 0.0
    %962 = vmatpush2.xpose.msra.mxu0 0.0
    %963 = vmatprep.subr.mxu0 0.0
    %964 = vmatpush2.xpose.msra.mxu0 0.0
    %965 = vmatprep.subr.mxu0 0.0
    %966 = vmatpush2.xpose.msra.mxu0 0.0
    %967 = vmatprep.subr.mxu0 0.0
    %968 = vmatpush2.xpose.msra.mxu0 0.0
    %969 = vmatprep.subr.mxu0 0.0
    %970 = vmatpush2.xpose.msra.mxu0 0.0
    %971 = vmatprep.subr.mxu0 0.0
    %972 = vmatpush2.xpose.msra.mxu0 0.0
    %973 = vmatprep.subr.mxu0 0.0
    %974 = vmatpush2.xpose.msra.mxu0 0.0
    %975 = vmatprep.subr.mxu0 0.0
    %976 = vmatpush2.xpose.msra.mxu0 0.0
    %977 = vmatprep.subr.mxu0 0.0
    %978 = vmatpush2.xpose.msra.mxu0 0.0
    %979 = vmatprep.mubr.f32.mxu0 0.0
    %980 = vmatmul.mubr.f32.gmra.mxu0 %v911
    %v981 = vpop.f32.mrf.mxu0
    %v982 = vadd.f32 0.0, %v981
    %v983 = vpop.f32.mrf.mxu0
    %984 = vdwg.mxu0
    %v985 = vsel %vm152, %v903, -inf
    %986 = vmax.xlane.f32.xlu0 %v985
    %v987 = vpop.xlane.xlu0 %986
    %v988 = vsel %vm152, %v982, -inf
    %989 = vmax.xlane.f32.xlu0 %v988
    %v990 = vpop.xlane.xlu0 %989
    %v991 = vsub.f32 %v903, %v987
    %v992 = vsub.f32 %v982, %v990
    %v993 = vmul.f32 %v991, 1.442695
    %v994 = vpow.pop %v993
    %v995 = vmul.f32 %v992, 1.442695
    %v996 = vpow.pop %v995
    %v997 = vsel %vm152, %v994, 0.0
    %998 = vadd.xlane.f32.xlu0 %v997
    %v999 = vpop.xlane.xlu0 %998
    %v1000 = vsel %vm152, %v996, 0.0
    %1001 = vadd.xlane.f32.xlu0 %v1000
    %v1002 = vpop.xlane.xlu0 %1001
    %v1003 = vrcp.pop %v999
    %v1004 = vrcp.pop %v1002
    %v1005 = vmul.f32 %v994, %v1003
    %v1006 = vmul.f32 %v996, %v1004
    %1007 = vrot.lane.b32.xlu0 %v825, 48
    %v1008 = vpop.permute.xlu0 %1007
    %v1011 = vsel %vm152, %v1005, 0
    %1013 = vmatprep.subr.mxu0 0.0
    %1014 = vmatpush1.msra.mxu0 0.0
    %1015 = vmatprep.subr.mxu0 0.0
    %1016 = vmatpush1.msra.mxu0 0.0
    %1017 = vmatprep.subr.mxu0 0.0
    %1018 = vmatpush1.msra.mxu0 0.0
    %1019 = vmatprep.subr.mxu0 0.0
    %1020 = vmatpush1.msra.mxu0 0.0
    %1021 = vmatprep.subr.mxu0 0.0
    %1022 = vmatpush1.msra.mxu0 0.0
    %1023 = vmatprep.subr.mxu0 0.0
    %1024 = vmatpush1.msra.mxu0 0.0
    %1025 = vmatprep.subr.mxu0 0.0
    %1026 = vmatpush1.msra.mxu0 0.0
    %1027 = vmatprep.subr.mxu0 0.0
    %1028 = vmatpush1.msra.mxu0 0.0
    %1029 = vmatprep.subr.mxu0 0.0
    %1030 = vmatpush1.msra.mxu0 0.0
    %1031 = vmatprep.subr.mxu0 0.0
    %1032 = vmatpush1.msra.mxu0 0.0
    %1033 = vmatprep.subr.mxu0 0.0
    %1034 = vmatpush1.msra.mxu0 0.0
    %1035 = vmatprep.subr.mxu0 0.0
    %1036 = vmatpush1.msra.mxu0 0.0
    %1037 = vmatprep.subr.mxu0 0.0
    %1038 = vmatpush1.msra.mxu0 0.0
    %1039 = vmatprep.subr.mxu0 0.0
    %1040 = vmatpush1.msra.mxu0 0.0
    %1041 = vmatprep.subr.mxu0 0.0
    %1042 = vmatpush1.msra.mxu0 0.0
    %1043 = vmatprep.subr.mxu0 0.0
    %1044 = vmatpush1.msra.mxu0 %v1008
    %1045 = vmatprep.subr.mxu0 0.0
    %1046 = vmatpush2.msra.mxu0 0.0
    %1047 = vmatprep.subr.mxu0 0.0
    %1048 = vmatpush2.msra.mxu0 0.0
    %1049 = vmatprep.subr.mxu0 0.0
    %1050 = vmatpush2.msra.mxu0 0.0
    %1051 = vmatprep.subr.mxu0 0.0
    %1052 = vmatpush2.msra.mxu0 0.0
    %1053 = vmatprep.subr.mxu0 0.0
    %1054 = vmatpush2.msra.mxu0 0.0
    %1055 = vmatprep.subr.mxu0 0.0
    %1056 = vmatpush2.msra.mxu0 0.0
    %1057 = vmatprep.subr.mxu0 0.0
    %1058 = vmatpush2.msra.mxu0 0.0
    %1059 = vmatprep.subr.mxu0 0.0
    %1060 = vmatpush2.msra.mxu0 0.0
    %1061 = vmatprep.subr.mxu0 0.0
    %1062 = vmatpush2.msra.mxu0 0.0
    %1063 = vmatprep.subr.mxu0 0.0
    %1064 = vmatpush2.msra.mxu0 0.0
    %1065 = vmatprep.subr.mxu0 0.0
    %1066 = vmatpush2.msra.mxu0 0.0
    %1067 = vmatprep.subr.mxu0 0.0
    %1068 = vmatpush2.msra.mxu0 0.0
    %1069 = vmatprep.subr.mxu0 0.0
    %1070 = vmatpush2.msra.mxu0 0.0
    %1071 = vmatprep.subr.mxu0 0.0
    %1072 = vmatpush2.msra.mxu0 0.0
    %1073 = vmatprep.subr.mxu0 0.0
    %1074 = vmatpush2.msra.mxu0 0.0
    %1075 = vmatprep.subr.mxu0 0.0
    %1076 = vmatpush2.msra.mxu0 0.0
    %1077 = vmatprep.mubr.f32.mxu0 0.0
    %1078 = vmatmul.mubr.f32.gmra.mxu0 %v1011
    %v1079 = vpop.f32.mrf.mxu0
    %v1080 = vadd.f32 0.0, %v1079
    %v1081 = vpop.f32.mrf.mxu0
    %1082 = vdwg.mxu0
    %1083 = vrot.lane.b32.xlu0 %v826, 48
    %v1084 = vpop.permute.xlu0 %1083
    %v1087 = vsel %vm152, %v1006, 0
    %1089 = vmatprep.subr.mxu0 0.0
    %1090 = vmatpush1.msra.mxu0 0.0
    %1091 = vmatprep.subr.mxu0 0.0
    %1092 = vmatpush1.msra.mxu0 0.0
    %1093 = vmatprep.subr.mxu0 0.0
    %1094 = vmatpush1.msra.mxu0 0.0
    %1095 = vmatprep.subr.mxu0 0.0
    %1096 = vmatpush1.msra.mxu0 0.0
    %1097 = vmatprep.subr.mxu0 0.0
    %1098 = vmatpush1.msra.mxu0 0.0
    %1099 = vmatprep.subr.mxu0 0.0
    %1100 = vmatpush1.msra.mxu0 0.0
    %1101 = vmatprep.subr.mxu0 0.0
    %1102 = vmatpush1.msra.mxu0 0.0
    %1103 = vmatprep.subr.mxu0 0.0
    %1104 = vmatpush1.msra.mxu0 0.0
    %1105 = vmatprep.subr.mxu0 0.0
    %1106 = vmatpush1.msra.mxu0 0.0
    %1107 = vmatprep.subr.mxu0 0.0
    %1108 = vmatpush1.msra.mxu0 0.0
    %1109 = vmatprep.subr.mxu0 0.0
    %1110 = vmatpush1.msra.mxu0 0.0
    %1111 = vmatprep.subr.mxu0 0.0
    %1112 = vmatpush1.msra.mxu0 0.0
    %1113 = vmatprep.subr.mxu0 0.0
    %1114 = vmatpush1.msra.mxu0 0.0
    %1115 = vmatprep.subr.mxu0 0.0
    %1116 = vmatpush1.msra.mxu0 0.0
    %1117 = vmatprep.subr.mxu0 0.0
    %1118 = vmatpush1.msra.mxu0 0.0
    %1119 = vmatprep.subr.mxu0 0.0
    %1120 = vmatpush1.msra.mxu0 %v1084
    %1121 = vmatprep.subr.mxu0 0.0
    %1122 = vmatpush2.msra.mxu0 0.0
    %1123 = vmatprep.subr.mxu0 0.0
    %1124 = vmatpush2.msra.mxu0 0.0
    %1125 = vmatprep.subr.mxu0 0.0
    %1126 = vmatpush2.msra.mxu0 0.0
    %1127 = vmatprep.subr.mxu0 0.0
    %1128 = vmatpush2.msra.mxu0 0.0
    %1129 = vmatprep.subr.mxu0 0.0
    %1130 = vmatpush2.msra.mxu0 0.0
    %1131 = vmatprep.subr.mxu0 0.0
    %1132 = vmatpush2.msra.mxu0 0.0
    %1133 = vmatprep.subr.mxu0 0.0
    %1134 = vmatpush2.msra.mxu0 0.0
    %1135 = vmatprep.subr.mxu0 0.0
    %1136 = vmatpush2.msra.mxu0 0.0
    %1137 = vmatprep.subr.mxu0 0.0
    %1138 = vmatpush2.msra.mxu0 0.0
    %1139 = vmatprep.subr.mxu0 0.0
    %1140 = vmatpush2.msra.mxu0 0.0
    %1141 = vmatprep.subr.mxu0 0.0
    %1142 = vmatpush2.msra.mxu0 0.0
    %1143 = vmatprep.subr.mxu0 0.0
    %1144 = vmatpush2.msra.mxu0 0.0
    %1145 = vmatprep.subr.mxu0 0.0
    %1146 = vmatpush2.msra.mxu0 0.0
    %1147 = vmatprep.subr.mxu0 0.0
    %1148 = vmatpush2.msra.mxu0 0.0
    %1149 = vmatprep.subr.mxu0 0.0
    %1150 = vmatpush2.msra.mxu0 0.0
    %1151 = vmatprep.subr.mxu0 0.0
    %1152 = vmatpush2.msra.mxu0 0.0
    %1153 = vmatprep.mubr.f32.mxu0 0.0
    %1154 = vmatmul.mubr.f32.gmra.mxu0 %v1087
    %v1155 = vpop.f32.mrf.mxu0
    %v1156 = vadd.f32 0.0, %v1155
    %v1157 = vpop.f32.mrf.mxu0
    %1158 = vdwg.mxu0
    %1161 = vrot.lane.b32.xlu0 %v1080, 16
    %v1162 = vpop.permute.xlu0 %1161
    %1163 = vrot.lane.b32.xlu0 %v1156, 16
    %v1164 = vpop.permute.xlu0 %1163
    %vm1167 = vcmask 195712
    %1168 = vst.msk [vmem:[#allocation3] sm:$0xff] %vm1167, %v1162
    %1169 = vst.msk [vmem:[#allocation3 + $0x8] sm:$0xff] %vm1167, %v1164
    %v1170 = vld [vmem:[#allocation2] sm:$0xff]
    %v1171 = vld [vmem:[#allocation2 + $0x8] sm:$0xff]
    %1173 = vrot.lane.b32.xlu0 %v1170, 104
    %v1174 = vpop.permute.xlu0 %1173
    %1175 = vrot.lane.b32.xlu0 %v1170, 72
    %v1176 = vpop.permute.xlu0 %1175
    %v1177 = vsel %vm152, %v1174, 0
    %v1179 = vsel %vm152, %v1176, 0
    %1181 = vmatprep.subr.mxu0 0.0
    %1182 = vmatpush1.xpose.msra.mxu0 0.0
    %1183 = vmatprep.subr.mxu0 0.0
    %1184 = vmatpush1.xpose.msra.mxu0 0.0
    %1185 = vmatprep.subr.mxu0 0.0
    %1186 = vmatpush1.xpose.msra.mxu0 0.0
    %1187 = vmatprep.subr.mxu0 0.0
    %1188 = vmatpush1.xpose.msra.mxu0 0.0
    %1189 = vmatprep.subr.mxu0 0.0
    %1190 = vmatpush1.xpose.msra.mxu0 0.0
    %1191 = vmatprep.subr.mxu0 0.0
    %1192 = vmatpush1.xpose.msra.mxu0 0.0
    %1193 = vmatprep.subr.mxu0 0.0
    %1194 = vmatpush1.xpose.msra.mxu0 0.0
    %1195 = vmatprep.subr.mxu0 0.0
    %1196 = vmatpush1.xpose.msra.mxu0 0.0
    %1197 = vmatprep.subr.mxu0 0.0
    %1198 = vmatpush1.xpose.msra.mxu0 0.0
    %1199 = vmatprep.subr.mxu0 0.0
    %1200 = vmatpush1.xpose.msra.mxu0 0.0
    %1201 = vmatprep.subr.mxu0 0.0
    %1202 = vmatpush1.xpose.msra.mxu0 0.0
    %1203 = vmatprep.subr.mxu0 0.0
    %1204 = vmatpush1.xpose.msra.mxu0 0.0
    %1205 = vmatprep.subr.mxu0 0.0
    %1206 = vmatpush1.xpose.msra.mxu0 0.0
    %1207 = vmatprep.subr.mxu0 0.0
    %1208 = vmatpush1.xpose.msra.mxu0 0.0
    %1209 = vmatprep.subr.mxu0 0.0
    %1210 = vmatpush1.xpose.msra.mxu0 0.0
    %1211 = vmatprep.subr.mxu0 0.0
    %1212 = vmatpush1.xpose.msra.mxu0 %v1179
    %1213 = vmatprep.subr.mxu0 0.0
    %1214 = vmatpush2.xpose.msra.mxu0 0.0
    %1215 = vmatprep.subr.mxu0 0.0
    %1216 = vmatpush2.xpose.msra.mxu0 0.0
    %1217 = vmatprep.subr.mxu0 0.0
    %1218 = vmatpush2.xpose.msra.mxu0 0.0
    %1219 = vmatprep.subr.mxu0 0.0
    %1220 = vmatpush2.xpose.msra.mxu0 0.0
    %1221 = vmatprep.subr.mxu0 0.0
    %1222 = vmatpush2.xpose.msra.mxu0 0.0
    %1223 = vmatprep.subr.mxu0 0.0
    %1224 = vmatpush2.xpose.msra.mxu0 0.0
    %1225 = vmatprep.subr.mxu0 0.0
    %1226 = vmatpush2.xpose.msra.mxu0 0.0
    %1227 = vmatprep.subr.mxu0 0.0
    %1228 = vmatpush2.xpose.msra.mxu0 0.0
    %1229 = vmatprep.subr.mxu0 0.0
    %1230 = vmatpush2.xpose.msra.mxu0 0.0
    %1231 = vmatprep.subr.mxu0 0.0
    %1232 = vmatpush2.xpose.msra.mxu0 0.0
    %1233 = vmatprep.subr.mxu0 0.0
    %1234 = vmatpush2.xpose.msra.mxu0 0.0
    %1235 = vmatprep.subr.mxu0 0.0
    %1236 = vmatpush2.xpose.msra.mxu0 0.0
    %1237 = vmatprep.subr.mxu0 0.0
    %1238 = vmatpush2.xpose.msra.mxu0 0.0
    %1239 = vmatprep.subr.mxu0 0.0
    %1240 = vmatpush2.xpose.msra.mxu0 0.0
    %1241 = vmatprep.subr.mxu0 0.0
    %1242 = vmatpush2.xpose.msra.mxu0 0.0
    %1243 = vmatprep.subr.mxu0 0.0
    %1244 = vmatpush2.xpose.msra.mxu0 0.0
    %1245 = vmatprep.mubr.f32.mxu0 0.0
    %1246 = vmatmul.mubr.f32.gmra.mxu0 %v1177
    %v1247 = vpop.f32.mrf.mxu0
    %v1248 = vadd.f32 0.0, %v1247
    %v1249 = vpop.f32.mrf.mxu0
    %1250 = vdwg.mxu0
    %1252 = vrot.lane.b32.xlu0 %v1171, 104
    %v1253 = vpop.permute.xlu0 %1252
    %1254 = vrot.lane.b32.xlu0 %v1171, 72
    %v1255 = vpop.permute.xlu0 %1254
    %v1256 = vsel %vm152, %v1253, 0
    %v1258 = vsel %vm152, %v1255, 0
    %1260 = vmatprep.subr.mxu0 0.0
    %1261 = vmatpush1.xpose.msra.mxu0 0.0
    %1262 = vmatprep.subr.mxu0 0.0
    %1263 = vmatpush1.xpose.msra.mxu0 0.0
    %1264 = vmatprep.subr.mxu0 0.0
    %1265 = vmatpush1.xpose.msra.mxu0 0.0
    %1266 = vmatprep.subr.mxu0 0.0
    %1267 = vmatpush1.xpose.msra.mxu0 0.0
    %1268 = vmatprep.subr.mxu0 0.0
    %1269 = vmatpush1.xpose.msra.mxu0 0.0
    %1270 = vmatprep.subr.mxu0 0.0
    %1271 = vmatpush1.xpose.msra.mxu0 0.0
    %1272 = vmatprep.subr.mxu0 0.0
    %1273 = vmatpush1.xpose.msra.mxu0 0.0
    %1274 = vmatprep.subr.mxu0 0.0
    %1275 = vmatpush1.xpose.msra.mxu0 0.0
    %1276 = vmatprep.subr.mxu0 0.0
    %1277 = vmatpush1.xpose.msra.mxu0 0.0
    %1278 = vmatprep.subr.mxu0 0.0
    %1279 = vmatpush1.xpose.msra.mxu0 0.0
    %1280 = vmatprep.subr.mxu0 0.0
    %1281 = vmatpush1.xpose.msra.mxu0 0.0
    %1282 = vmatprep.subr.mxu0 0.0
    %1283 = vmatpush1.xpose.msra.mxu0 0.0
    %1284 = vmatprep.subr.mxu0 0.0
    %1285 = vmatpush1.xpose.msra.mxu0 0.0
    %1286 = vmatprep.subr.mxu0 0.0
    %1287 = vmatpush1.xpose.msra.mxu0 0.0
    %1288 = vmatprep.subr.mxu0 0.0
    %1289 = vmatpush1.xpose.msra.mxu0 0.0
    %1290 = vmatprep.subr.mxu0 0.0
    %1291 = vmatpush1.xpose.msra.mxu0 %v1258
    %1292 = vmatprep.subr.mxu0 0.0
    %1293 = vmatpush2.xpose.msra.mxu0 0.0
    %1294 = vmatprep.subr.mxu0 0.0
    %1295 = vmatpush2.xpose.msra.mxu0 0.0
    %1296 = vmatprep.subr.mxu0 0.0
    %1297 = vmatpush2.xpose.msra.mxu0 0.0
    %1298 = vmatprep.subr.mxu0 0.0
    %1299 = vmatpush2.xpose.msra.mxu0 0.0
    %1300 = vmatprep.subr.mxu0 0.0
    %1301 = vmatpush2.xpose.msra.mxu0 0.0
    %1302 = vmatprep.subr.mxu0 0.0
    %1303 = vmatpush2.xpose.msra.mxu0 0.0
    %1304 = vmatprep.subr.mxu0 0.0
    %1305 = vmatpush2.xpose.msra.mxu0 0.0
    %1306 = vmatprep.subr.mxu0 0.0
    %1307 = vmatpush2.xpose.msra.mxu0 0.0
    %1308 = vmatprep.subr.mxu0 0.0
    %1309 = vmatpush2.xpose.msra.mxu0 0.0
    %1310 = vmatprep.subr.mxu0 0.0
    %1311 = vmatpush2.xpose.msra.mxu0 0.0
    %1312 = vmatprep.subr.mxu0 0.0
    %1313 = vmatpush2.xpose.msra.mxu0 0.0
    %1314 = vmatprep.subr.mxu0 0.0
    %1315 = vmatpush2.xpose.msra.mxu0 0.0
    %1316 = vmatprep.subr.mxu0 0.0
    %1317 = vmatpush2.xpose.msra.mxu0 0.0
    %1318 = vmatprep.subr.mxu0 0.0
    %1319 = vmatpush2.xpose.msra.mxu0 0.0
    %1320 = vmatprep.subr.mxu0 0.0
    %1321 = vmatpush2.xpose.msra.mxu0 0.0
    %1322 = vmatprep.subr.mxu0 0.0
    %1323 = vmatpush2.xpose.msra.mxu0 0.0
    %1324 = vmatprep.mubr.f32.mxu0 0.0
    %1325 = vmatmul.mubr.f32.gmra.mxu0 %v1256
    %v1326 = vpop.f32.mrf.mxu0
    %v1327 = vadd.f32 0.0, %v1326
    %v1328 = vpop.f32.mrf.mxu0
    %1329 = vdwg.mxu0
    %v1330 = vsel %vm152, %v1248, -inf
    %1331 = vmax.xlane.f32.xlu0 %v1330
    %v1332 = vpop.xlane.xlu0 %1331
    %v1333 = vsel %vm152, %v1327, -inf
    %1334 = vmax.xlane.f32.xlu0 %v1333
    %v1335 = vpop.xlane.xlu0 %1334
    %v1336 = vsub.f32 %v1248, %v1332
    %v1337 = vsub.f32 %v1327, %v1335
    %v1338 = vmul.f32 %v1336, 1.442695
    %v1339 = vpow.pop %v1338
    %v1340 = vmul.f32 %v1337, 1.442695
    %v1341 = vpow.pop %v1340
    %v1342 = vsel %vm152, %v1339, 0.0
    %1343 = vadd.xlane.f32.xlu0 %v1342
    %v1344 = vpop.xlane.xlu0 %1343
    %v1345 = vsel %vm152, %v1341, 0.0
    %1346 = vadd.xlane.f32.xlu0 %v1345
    %v1347 = vpop.xlane.xlu0 %1346
    %v1348 = vrcp.pop %v1344
    %v1349 = vrcp.pop %v1347
    %v1350 = vmul.f32 %v1339, %v1348
    %v1351 = vmul.f32 %v1341, %v1349
    %1352 = vrot.lane.b32.xlu0 %v1170, 40
    %v1353 = vpop.permute.xlu0 %1352
    %v1356 = vsel %vm152, %v1350, 0
    %1358 = vmatprep.subr.mxu0 0.0
    %1359 = vmatpush1.msra.mxu0 0.0
    %1360 = vmatprep.subr.mxu0 0.0
    %1361 = vmatpush1.msra.mxu0 0.0
    %1362 = vmatprep.subr.mxu0 0.0
    %1363 = vmatpush1.msra.mxu0 0.0
    %1364 = vmatprep.subr.mxu0 0.0
    %1365 = vmatpush1.msra.mxu0 0.0
    %1366 = vmatprep.subr.mxu0 0.0
    %1367 = vmatpush1.msra.mxu0 0.0
    %1368 = vmatprep.subr.mxu0 0.0
    %1369 = vmatpush1.msra.mxu0 0.0
    %1370 = vmatprep.subr.mxu0 0.0
    %1371 = vmatpush1.msra.mxu0 0.0
    %1372 = vmatprep.subr.mxu0 0.0
    %1373 = vmatpush1.msra.mxu0 0.0
    %1374 = vmatprep.subr.mxu0 0.0
    %1375 = vmatpush1.msra.mxu0 0.0
    %1376 = vmatprep.subr.mxu0 0.0
    %1377 = vmatpush1.msra.mxu0 0.0
    %1378 = vmatprep.subr.mxu0 0.0
    %1379 = vmatpush1.msra.mxu0 0.0
    %1380 = vmatprep.subr.mxu0 0.0
    %1381 = vmatpush1.msra.mxu0 0.0
    %1382 = vmatprep.subr.mxu0 0.0
    %1383 = vmatpush1.msra.mxu0 0.0
    %1384 = vmatprep.subr.mxu0 0.0
    %1385 = vmatpush1.msra.mxu0 0.0
    %1386 = vmatprep.subr.mxu0 0.0
    %1387 = vmatpush1.msra.mxu0 0.0
    %1388 = vmatprep.subr.mxu0 0.0
    %1389 = vmatpush1.msra.mxu0 %v1353
    %1390 = vmatprep.subr.mxu0 0.0
    %1391 = vmatpush2.msra.mxu0 0.0
    %1392 = vmatprep.subr.mxu0 0.0
    %1393 = vmatpush2.msra.mxu0 0.0
    %1394 = vmatprep.subr.mxu0 0.0
    %1395 = vmatpush2.msra.mxu0 0.0
    %1396 = vmatprep.subr.mxu0 0.0
    %1397 = vmatpush2.msra.mxu0 0.0
    %1398 = vmatprep.subr.mxu0 0.0
    %1399 = vmatpush2.msra.mxu0 0.0
    %1400 = vmatprep.subr.mxu0 0.0
    %1401 = vmatpush2.msra.mxu0 0.0
    %1402 = vmatprep.subr.mxu0 0.0
    %1403 = vmatpush2.msra.mxu0 0.0
    %1404 = vmatprep.subr.mxu0 0.0
    %1405 = vmatpush2.msra.mxu0 0.0
    %1406 = vmatprep.subr.mxu0 0.0
    %1407 = vmatpush2.msra.mxu0 0.0
    %1408 = vmatprep.subr.mxu0 0.0
    %1409 = vmatpush2.msra.mxu0 0.0
    %1410 = vmatprep.subr.mxu0 0.0
    %1411 = vmatpush2.msra.mxu0 0.0
    %1412 = vmatprep.subr.mxu0 0.0
    %1413 = vmatpush2.msra.mxu0 0.0
    %1414 = vmatprep.subr.mxu0 0.0
    %1415 = vmatpush2.msra.mxu0 0.0
    %1416 = vmatprep.subr.mxu0 0.0
    %1417 = vmatpush2.msra.mxu0 0.0
    %1418 = vmatprep.subr.mxu0 0.0
    %1419 = vmatpush2.msra.mxu0 0.0
    %1420 = vmatprep.subr.mxu0 0.0
    %1421 = vmatpush2.msra.mxu0 0.0
    %1422 = vmatprep.mubr.f32.mxu0 0.0
    %1423 = vmatmul.mubr.f32.gmra.mxu0 %v1356
    %v1424 = vpop.f32.mrf.mxu0
    %v1425 = vadd.f32 0.0, %v1424
    %v1426 = vpop.f32.mrf.mxu0
    %1427 = vdwg.mxu0
    %1428 = vrot.lane.b32.xlu0 %v1171, 40
    %v1429 = vpop.permute.xlu0 %1428
    %v1432 = vsel %vm152, %v1351, 0
    %1434 = vmatprep.subr.mxu0 0.0
    %1435 = vmatpush1.msra.mxu0 0.0
    %1436 = vmatprep.subr.mxu0 0.0
    %1437 = vmatpush1.msra.mxu0 0.0
    %1438 = vmatprep.subr.mxu0 0.0
    %1439 = vmatpush1.msra.mxu0 0.0
    %1440 = vmatprep.subr.mxu0 0.0
    %1441 = vmatpush1.msra.mxu0 0.0
    %1442 = vmatprep.subr.mxu0 0.0
    %1443 = vmatpush1.msra.mxu0 0.0
    %1444 = vmatprep.subr.mxu0 0.0
    %1445 = vmatpush1.msra.mxu0 0.0
    %1446 = vmatprep.subr.mxu0 0.0
    %1447 = vmatpush1.msra.mxu0 0.0
    %1448 = vmatprep.subr.mxu0 0.0
    %1449 = vmatpush1.msra.mxu0 0.0
    %1450 = vmatprep.subr.mxu0 0.0
    %1451 = vmatpush1.msra.mxu0 0.0
    %1452 = vmatprep.subr.mxu0 0.0
    %1453 = vmatpush1.msra.mxu0 0.0
    %1454 = vmatprep.subr.mxu0 0.0
    %1455 = vmatpush1.msra.mxu0 0.0
    %1456 = vmatprep.subr.mxu0 0.0
    %1457 = vmatpush1.msra.mxu0 0.0
    %1458 = vmatprep.subr.mxu0 0.0
    %1459 = vmatpush1.msra.mxu0 0.0
    %1460 = vmatprep.subr.mxu0 0.0
    %1461 = vmatpush1.msra.mxu0 0.0
    %1462 = vmatprep.subr.mxu0 0.0
    %1463 = vmatpush1.msra.mxu0 0.0
    %1464 = vmatprep.subr.mxu0 0.0
    %1465 = vmatpush1.msra.mxu0 %v1429
    %1466 = vmatprep.subr.mxu0 0.0
    %1467 = vmatpush2.msra.mxu0 0.0
    %1468 = vmatprep.subr.mxu0 0.0
    %1469 = vmatpush2.msra.mxu0 0.0
    %1470 = vmatprep.subr.mxu0 0.0
    %1471 = vmatpush2.msra.mxu0 0.0
    %1472 = vmatprep.subr.mxu0 0.0
    %1473 = vmatpush2.msra.mxu0 0.0
    %1474 = vmatprep.subr.mxu0 0.0
    %1475 = vmatpush2.msra.mxu0 0.0
    %1476 = vmatprep.subr.mxu0 0.0
    %1477 = vmatpush2.msra.mxu0 0.0
    %1478 = vmatprep.subr.mxu0 0.0
    %1479 = vmatpush2.msra.mxu0 0.0
    %1480 = vmatprep.subr.mxu0 0.0
    %1481 = vmatpush2.msra.mxu0 0.0
    %1482 = vmatprep.subr.mxu0 0.0
    %1483 = vmatpush2.msra.mxu0 0.0
    %1484 = vmatprep.subr.mxu0 0.0
    %1485 = vmatpush2.msra.mxu0 0.0
    %1486 = vmatprep.subr.mxu0 0.0
    %1487 = vmatpush2.msra.mxu0 0.0
    %1488 = vmatprep.subr.mxu0 0.0
    %1489 = vmatpush2.msra.mxu0 0.0
    %1490 = vmatprep.subr.mxu0 0.0
    %1491 = vmatpush2.msra.mxu0 0.0
    %1492 = vmatprep.subr.mxu0 0.0
    %1493 = vmatpush2.msra.mxu0 0.0
    %1494 = vmatprep.subr.mxu0 0.0
    %1495 = vmatpush2.msra.mxu0 0.0
    %1496 = vmatprep.subr.mxu0 0.0
    %1497 = vmatpush2.msra.mxu0 0.0
    %1498 = vmatprep.mubr.f32.mxu0 0.0
    %1499 = vmatmul.mubr.f32.gmra.mxu0 %v1432
    %v1500 = vpop.f32.mrf.mxu0
    %v1501 = vadd.f32 0.0, %v1500
    %v1502 = vpop.f32.mrf.mxu0
    %1503 = vdwg.mxu0
    %1506 = vrot.lane.b32.xlu0 %v1425, 24
    %v1507 = vpop.permute.xlu0 %1506
    %1508 = vrot.lane.b32.xlu0 %v1501, 24
    %v1509 = vpop.permute.xlu0 %1508
    %vm1512 = vcmask 261312
    %1513 = vst.msk [vmem:[#allocation3] sm:$0xff] %vm1512, %v1507
    %1514 = vst.msk [vmem:[#allocation3 + $0x8] sm:$0xff] %vm1512, %v1509
    %v1515 = vld [vmem:[#allocation3] sm:$0xff]
    %v1516 = vld [vmem:[#allocation3 + $0x8] sm:$0xff]
    %v1517 = vld [vmem:[#allocation9] sm:$0xff]
    %v1518 = vld [vmem:[#allocation9 + $0x8] sm:$0xff]
    %v1519 = vld [vmem:[#allocation9 + $0x10] sm:$0xff]
    %v1520 = vld [vmem:[#allocation9 + $0x18] sm:$0xff]
    %v1522 = vsel %vm62, %v1515, 0
    %v1525 = vsel %vm62, %v1516, 0
    %1527 = vmatprep.subr.mxu0 0.0
    %1528 = vmatpush1.msra.mxu0 0.0
    %1529 = vmatprep.subr.mxu0 0.0
    %1530 = vmatpush1.msra.mxu0 0.0
    %1531 = vmatprep.subr.mxu0 0.0
    %1532 = vmatpush1.msra.mxu0 0.0
    %1533 = vmatprep.subr.mxu0 0.0
    %1534 = vmatpush1.msra.mxu0 0.0
    %1535 = vmatprep.subr.mxu0 0.0
    %1536 = vmatpush1.msra.mxu0 0.0
    %1537 = vmatprep.subr.mxu0 0.0
    %1538 = vmatpush1.msra.mxu0 0.0
    %1539 = vmatprep.subr.mxu0 0.0
    %1540 = vmatpush1.msra.mxu0 0.0
    %1541 = vmatprep.subr.mxu0 0.0
    %1542 = vmatpush1.msra.mxu0 0.0
    %1543 = vmatprep.subr.mxu0 0.0
    %1544 = vmatpush1.msra.mxu0 0.0
    %1545 = vmatprep.subr.mxu0 0.0
    %1546 = vmatpush1.msra.mxu0 0.0
    %1547 = vmatprep.subr.mxu0 0.0
    %1548 = vmatpush1.msra.mxu0 0.0
    %1549 = vmatprep.subr.mxu0 0.0
    %1550 = vmatpush1.msra.mxu0 0.0
    %1551 = vmatprep.subr.mxu0 0.0
    %1552 = vmatpush1.msra.mxu0 %v1520
    %1553 = vmatprep.subr.mxu0 0.0
    %1554 = vmatpush1.msra.mxu0 %v1519
    %1555 = vmatprep.subr.mxu0 0.0
    %1556 = vmatpush1.msra.mxu0 %v1518
    %1557 = vmatprep.subr.mxu0 0.0
    %1558 = vmatpush1.msra.mxu0 %v1517
    %1559 = vmatprep.subr.mxu0 0.0
    %1560 = vmatpush2.msra.mxu0 0.0
    %1561 = vmatprep.subr.mxu0 0.0
    %1562 = vmatpush2.msra.mxu0 0.0
    %1563 = vmatprep.subr.mxu0 0.0
    %1564 = vmatpush2.msra.mxu0 0.0
    %1565 = vmatprep.subr.mxu0 0.0
    %1566 = vmatpush2.msra.mxu0 0.0
    %1567 = vmatprep.subr.mxu0 0.0
    %1568 = vmatpush2.msra.mxu0 0.0
    %1569 = vmatprep.subr.mxu0 0.0
    %1570 = vmatpush2.msra.mxu0 0.0
    %1571 = vmatprep.subr.mxu0 0.0
    %1572 = vmatpush2.msra.mxu0 0.0
    %1573 = vmatprep.subr.mxu0 0.0
    %1574 = vmatpush2.msra.mxu0 0.0
    %1575 = vmatprep.subr.mxu0 0.0
    %1576 = vmatpush2.msra.mxu0 0.0
    %1577 = vmatprep.subr.mxu0 0.0
    %1578 = vmatpush2.msra.mxu0 0.0
    %1579 = vmatprep.subr.mxu0 0.0
    %1580 = vmatpush2.msra.mxu0 0.0
    %1581 = vmatprep.subr.mxu0 0.0
    %1582 = vmatpush2.msra.mxu0 0.0
    %1583 = vmatprep.subr.mxu0 0.0
    %1584 = vmatpush2.msra.mxu0 0.0
    %1585 = vmatprep.subr.mxu0 0.0
    %1586 = vmatpush2.msra.mxu0 0.0
    %1587 = vmatprep.subr.mxu0 0.0
    %1588 = vmatpush2.msra.mxu0 0.0
    %1589 = vmatprep.subr.mxu0 0.0
    %1590 = vmatpush2.msra.mxu0 0.0
    %1591 = vmatprep.mubr.f32.mxu0 0.0
    %1592 = vmatmul.mubr.f32.gmra.mxu0 %v1522
    %v1593 = vpop.f32.mrf.mxu0
    %v1594 = vadd.f32 0.0, %v1593
    %v1595 = vpop.f32.mrf.mxu0
    %1596 = vmatprep.mubr.f32.mxu0 0.0
    %1597 = vmatmul.mubr.f32.gmra.mxu0 %v1525
    %v1598 = vpop.f32.mrf.mxu0
    %v1599 = vadd.f32 0.0, %v1598
    %v1600 = vpop.f32.mrf.mxu0
    %1601 = vdwg.mxu0
    %1602 = vst.msk [vmem:[#allocation10] sm:$0xff] %vm62, %v1594
    %1603 = vst.msk [vmem:[#allocation10 + $0x8] sm:$0xff] %vm62, %v1599
    // Predicated region
    $region26: #{tpu_custom_call.1} parent=1 // pred_check
      _
    $region27: #{tpu_custom_call.1} parent=1 // pred_check_branch
      %1605 = sbr.rel (0) target = $region29
    $region28: #{tpu_custom_call.1} parent=1 // pred_region
      %s1607 = ssub.s32 256, 256
      %1608 = vsyncadd [#allocation6], %s1607
      %s1609 = sshll.u32 [#allocation10], 4
      %s1610 = int_to_ptr.vmem [resolvable:$true] %s1609
      %1615 = dma.vmem_to_hbm [thread:$0]  %s1610, 256, %s3, [#allocation6], 128, 128, 8
    $region29: #{tpu_custom_call.1} parent=1 // pred_fallthru
      _
    // Predicated region
    $region30: #{tpu_custom_call.1} parent=1 // pred_check
      _
    $region31: #{tpu_custom_call.1} parent=1 // pred_check_branch
      %1617 = sbr.rel (0) target = $region33
    $region32: #{tpu_custom_call.1} parent=1 // pred_region
      %1618 = dma.done [#allocation6], 256
    $region33: #{tpu_custom_call.1} parent=1 // pred_fallthru
      _
    %1619 = vsyncpa [#allocation5], 1
    %1620 = vsyncpa [#allocation8], 1
    %1621 = vsyncpa [#allocation6], 1

</llo_original>
